<compile_context>
chip_gen: v5e
topology: v5e:2x2
jax: 0.10.0
libtpu: 0.0.40
codegen_flags: <defaults>
</compile_context>

<pallas_src>
import jax
import jax.numpy as jnp
from jax import lax
from jax.experimental import pallas as pl
from jax.experimental.pallas import tpu as pltpu


# ------------------------------ fused model kernel -----------------------------

def _make_fused_lstm_kernel(num_layers, batch, b_pad, seq_len, gw, hidden):
    """gw = 4*hidden = packed gate lane width (must be 128 for this layout)."""

    def kernel(x_ref, *refs):
        *layer_refs, fc_w_ref, fc_b_ref, out_ref, xw_ref = refs

        # Static lane mask, hoisted (JAX does not CSE broadcast_in_dim):
        # gates are packed [i | f | o | g]; lanes < 3*H get sigmoid, lanes >= 3*H get tanh.
        lane = lax.broadcasted_iota(jnp.int32, (b_pad, gw), 1)
        sig_mask = lane < 3 * hidden

        # Layer-0 hoisted input projection for ALL time steps (off the serial chain),
        # stored in the VMEM scratch (flat vreg pressure, no temporaries).
        w_ih0 = layer_refs[0][...]                       # (D_in, gw) bf16
        b0 = layer_refs[2][...]                          # (1, gw)  f32
        xw_ref[...] = jnp.dot(x_ref[...], w_ih0,
                              preferred_element_type=jnp.float32) + b0

        h_last = None
        for layer in range(num_layers):
            w_hh = layer_refs[3 * layer + 1][...]        # (gw, gw) bf16, rows >= H are zero
            last_layer = (layer + 1 == num_layers)
            if not last_layer:
                w_ih_nx = layer_refs[3 * (layer + 1)][...]      # (gw, gw) bf16, rows >= H zero
                b_nx = layer_refs[3 * (layer + 1) + 2][...]     # (1, gw)  f32

            h = jnp.zeros((b_pad, gw), jnp.float32)      # h0 = 0 (matches torch.zeros)
            c = jnp.zeros((b_pad, gw), jnp.float32)      # c0 = 0
            # Trace-time-unrolled recurrence (T small); h/c live in vregs.
            for t in range(seq_len):
                r0 = t * b_pad                           # sublane-aligned (multiple of 8)
                # Single (8,128)x(128,128) MXU tile on the serial chain; garbage lanes of h
                # hit zero rows of W_hh.
                g_pre = xw_ref[r0:r0 + b_pad, :] + jnp.dot(
                    h.astype(jnp.bfloat16), w_hh,
                    preferred_element_type=jnp.float32)          # (b_pad, gw)
                # 2 EUP pushes for all four gates: sigmoid == 0.5*(tanh(x/2)+1).
                sig = 0.5 * (jnp.tanh(0.5 * g_pre) + 1.0)
                tnh = jnp.tanh(g_pre)
                act = jnp.where(sig_mask, sig, tnh)      # [sig(i)|sig(f)|sig(o)|tanh(g)]
                # XLU rolls align f/o/g groups onto the i/c lanes (0..H-1).
                f_al = pltpu.roll(act, 3 * hidden, axis=1)   # f -> lanes 0..H-1
                o_al = pltpu.roll(act, 2 * hidden, axis=1)   # o -> lanes 0..H-1
                g_al = pltpu.roll(act, 1 * hidden, axis=1)   # g -> lanes 0..H-1
                c = f_al * c + act * g_al                # valid in lanes < H; rest bounded
                h = o_al * jnp.tanh(c)                   # 3rd EUP push of the step
                if not last_layer:
                    # Interleave next layer's input projection while EUP/VPU run;
                    # W_ih_next rows >= H are zero -> kills h's garbage lanes.
                    xw_ref[r0:r0 + b_pad, :] = jnp.dot(
                        h.astype(jnp.bfloat16), w_ih_nx,
                        preferred_element_type=jnp.float32) + b_nx
            h_last = h

        # fc head on the final hidden state (out[:, -1, :] @ W_fc^T + b_fc).
        # fc_w lanes >= H are zero, so the full-lane reduce ignores h's garbage lanes.
        out = jnp.sum(h_last * fc_w_ref[...], axis=-1, keepdims=True) + fc_b_ref[...]
        out_ref[...] = out[0:batch, :].astype(out_ref.dtype)

    return kernel


def lstm_model_forward(x, packed):
    """Reproduces LSTMModel.forward: multi-layer LSTM -> fc(out[:, -1, :]). x: (B, T, D)."""
    B, T, D = x.shape
    layers = packed["layers"]
    num_layers = len(layers)
    gw = packed["fc_w"].shape[1]                  # packed gate width = 4*H (128 for H=32)
    hidden = gw // 4
    b_pad = pl.cdiv(B, 8) * 8                     # pad batch to the f32 sublane count

    # Time-major, sublane-padded 2-D input: row t*b_pad + b holds x[b, t].  bf16 for the MXU.
    x_tm = jnp.transpose(x, (1, 0, 2))                                     # (T, B, D)
    x_tm = jnp.pad(x_tm, ((0, 0), (0, b_pad - B), (0, 0)))                 # (T, b_pad, D)
    x2d = x_tm.reshape(T * b_pad, D).astype(jnp.bfloat16)

    args = [x2d]
    for (w_ih_p, w_hh_p, b_p) in layers:
        args += [w_ih_p, w_hh_p, b_p]
    args += [packed["fc_w"], packed["fc_b"]]

    vmem = pl.BlockSpec(memory_space=pltpu.MemorySpace.VMEM)
    kernel = _make_fused_lstm_kernel(num_layers, B, b_pad, T, gw, hidden)
    return pl.pallas_call(                         # no grid: single invocation, all in VMEM
        kernel,
        out_shape=jax.ShapeDtypeStruct((B, 1), jnp.float32),
        in_specs=[vmem] * len(args),
        out_specs=vmem,
        scratch_shapes=[pltpu.VMEM((T * b_pad, gw), jnp.float32)],
    )(*args)


# ----------------------------- parameter init / packing ------------------------

def init_torch_params(key, input_size, hidden_size, num_layers):
    """PyTorch-layout params, uniform(-1/sqrt(H), 1/sqrt(H)) like nn.LSTM / nn.Linear."""
    k = 1.0 / float(hidden_size) ** 0.5
    keys = jax.random.split(key, num_layers * 4 + 2)
    ki = 0
    lstm = []
    for layer in range(num_layers):
        d_in = input_size if layer == 0 else hidden_size
        w_ih = jax.random.uniform(keys[ki], (4 * hidden_size, d_in),
                                  minval=-k, maxval=k, dtype=jnp.float32); ki += 1
        w_hh = jax.random.uniform(keys[ki], (4 * hidden_size, hidden_size),
                                  minval=-k, maxval=k, dtype=jnp.float32); ki += 1
        b_ih = jax.random.uniform(keys[ki], (4 * hidden_size,),
                                  minval=-k, maxval=k, dtype=jnp.float32); ki += 1
        b_hh = jax.random.uniform(keys[ki], (4 * hidden_size,),
                                  minval=-k, maxval=k, dtype=jnp.float32); ki += 1
        lstm.append((w_ih, w_hh, b_ih, b_hh))
    fc_w = jax.random.uniform(keys[ki], (1, hidden_size),
                              minval=-k, maxval=k, dtype=jnp.float32); ki += 1
    fc_b = jax.random.uniform(keys[ki], (1,),
                              minval=-k, maxval=k, dtype=jnp.float32)
    return {"lstm": lstm, "fc_w": fc_w, "fc_b": fc_b}


def _reorder_gate_cols(w_t, H):
    """(rows, 4H) in PyTorch gate order [i, f, g, o] -> packed order [i, f, o, g]."""
    return jnp.concatenate(
        [w_t[:, 0:H], w_t[:, H:2 * H], w_t[:, 3 * H:4 * H], w_t[:, 2 * H:3 * H]], axis=1)


def pack_params(torch_params, input_size):
    """Pack PyTorch-layout weights into the kernel's packed-gate, pre-transposed layout."""
    H = torch_params["lstm"][0][1].shape[1]
    # TODO(synk): the packed-gate layout assumes 4*H == 128 (one lane group); generalize
    #             with per-gate lane padding if hidden_size != 32.
    assert 4 * H == 128, "packed-gate layout requires 4*hidden_size == 128"
    gw = 4 * H
    layers = []
    for li, (w_ih, w_hh, b_ih, b_hh) in enumerate(torch_params["lstm"]):
        w_ih_p = _reorder_gate_cols(w_ih.T, H)                      # (D_in, gw)
        if li > 0:
            # Layer >= 1 consumes the full gw-lane h vector; rows >= H must be zero so the
            # bounded garbage in h's upper lanes never leaks into the gates.
            w_ih_p = jnp.concatenate(
                [w_ih_p, jnp.zeros((gw - H, gw), jnp.float32)], axis=0)
        w_hh_p = _reorder_gate_cols(w_hh.T, H)                      # (H, gw)
        w_hh_p = jnp.concatenate(
            [w_hh_p, jnp.zeros((gw - H, gw), jnp.float32)], axis=0)  # (gw, gw)
        b_p = _reorder_gate_cols((b_ih + b_hh).reshape(1, 4 * H), H)  # (1, gw)
        layers.append((w_ih_p.astype(jnp.bfloat16),                 # bf16 MXU inputs
                       w_hh_p.astype(jnp.bfloat16),
                       b_p.astype(jnp.float32)))
    fc_w_p = jnp.zeros((1, gw), jnp.float32).at[:, :H].set(torch_params["fc_w"])
    fc_b_p = torch_params["fc_b"].reshape(1, 1).astype(jnp.float32)
    return {"layers": layers, "fc_w": fc_w_p, "fc_b": fc_b_p}


# ------------------------------- pure-JAX reference ----------------------------

def lstm_model_reference(x, tp):
    """Straightforward JAX replica of LSTMModel.forward (eval semantics)."""
    prec = lax.Precision.HIGHEST
    B, T, _ = x.shape
    h_seq = x
    for (w_ih, w_hh, b_ih, b_hh) in tp["lstm"]:
        H = w_hh.shape[1]
        h = jnp.zeros((B, H), jnp.float32)
        c = jnp.zeros((B, H), jnp.float32)
        outs = []
        for t in range(T):
            gates = (jnp.dot(h_seq[:, t, :], w_ih.T, precision=prec) + b_ih
                     + jnp.dot(h, w_hh.T, precision=prec) + b_hh)
            i = jax.nn.sigmoid(gates[:, 0 * H:1 * H])
            f = jax.nn.sigmoid(gates[:, 1 * H:2 * H])
            g = jnp.tanh(gates[:, 2 * H:3 * H])
            o = jax.nn.sigmoid(gates[:, 3 * H:4 * H])
            c = f * c + i * g
            h = o * jnp.tanh(c)
            outs.append(h)
        h_seq = jnp.stack(outs, axis=1)
    return jnp.dot(h_seq[:, -1, :], tp["fc_w"].T, precision=prec) + tp["fc_b"]


# ------------------------------------- main -------------------------------------

if __name__ == "__main__":
    # hyperparameters = {'hidden_size': 32, 'num_layers': 2, 'dropout': 0.0}
    # TODO(synk): nn.LSTM inter-layer dropout is training-only; eval semantics (no dropout).
    B, T, D, H, L = 2, 8, 8, 32, 2

    key = jax.random.PRNGKey(0)
    kx, kp = jax.random.split(key)
    x = jax.random.normal(kx, (B, T, D), dtype=jnp.float32)

    torch_params = init_torch_params(kp, input_size=D, hidden_size=H, num_layers=L)
    packed = pack_params(torch_params, input_size=D)

    out = jax.jit(lstm_model_forward)(x, packed)
    out = jax.block_until_ready(out)
    assert out.shape == (B, 1) and out.dtype == jnp.float32

    ref = lstm_model_reference(x, torch_params)
    # Slightly looser than the previous f32 check because the MXU inputs are now bf16
    # (expected error ~1e-3 for these magnitudes).
    assert jnp.allclose(out, ref, atol=2e-2, rtol=2e-2), (out, ref)

    print("KERNEL_OK")
</pallas_src>

<mosaic_0001>
module attributes {stable_mosaic.version = 11 : i64} {
  func.func @kernel(%arg0: memref<64x8xbf16, #tpu.memory_space<vmem>>, %arg1: memref<8x128xbf16, #tpu.memory_space<vmem>>, %arg2: memref<128x128xbf16, #tpu.memory_space<vmem>>, %arg3: memref<1x128xf32, #tpu.memory_space<vmem>>, %arg4: memref<128x128xbf16, #tpu.memory_space<vmem>>, %arg5: memref<128x128xbf16, #tpu.memory_space<vmem>>, %arg6: memref<1x128xf32, #tpu.memory_space<vmem>>, %arg7: memref<1x128xf32, #tpu.memory_space<vmem>>, %arg8: memref<1x1xf32, #tpu.memory_space<vmem>>, %arg9: memref<2x1xf32, #tpu.memory_space<vmem>>, %arg10: memref<64x128xf32, #tpu.memory_space<vmem>>) attributes {dimension_semantics = [], scalar_prefetch = 0 : i64, scratch_operands = 1 : i64, tpu.core_type = #tpu.core_type<tc>} {
    %0 = tpu.iota {dimensions = array<i32: 1>} : vector<8x128xi32>
    %c96_i32 = arith.constant 96 : i32
    %1 = vector.broadcast %c96_i32 : i32 to vector<8x128xi32>
    %2 = arith.cmpi slt, %0, %1 : vector<8x128xi32>
    %c0 = arith.constant 0 : index
    %c0_0 = arith.constant 0 : index
    %3 = vector.load %arg1[%c0, %c0_0] : memref<8x128xbf16, #tpu.memory_space<vmem>>, vector<8x128xbf16>
    %c0_1 = arith.constant 0 : index
    %c0_2 = arith.constant 0 : index
    %4 = vector.load %arg3[%c0_1, %c0_2] : memref<1x128xf32, #tpu.memory_space<vmem>>, vector<1x128xf32>
    %c0_3 = arith.constant 0 : index
    %c0_4 = arith.constant 0 : index
    %5 = vector.load %arg0[%c0_3, %c0_4] : memref<64x8xbf16, #tpu.memory_space<vmem>>, vector<64x8xbf16>
    %cst = arith.constant dense<0.000000e+00> : vector<64x128xf32>
    %6 = tpu.matmul %5, %3, %cst {dimension_numbers = #tpu.dot_dimension_numbers<[1], [0], [0], [1], [0, 0, 1, 1], [], []>} : vector<64x8xbf16>, vector<8x128xbf16>, vector<64x128xf32> -> vector<64x128xf32>
    %7 = vector.broadcast %4 : vector<1x128xf32> to vector<64x128xf32>
    %8 = arith.addf %6, %7 : vector<64x128xf32>
    %c0_5 = arith.constant 0 : index
    %c0_6 = arith.constant 0 : index
    %9 = vector.load %arg10[%c0_5, %c0_6] : memref<64x128xf32, #tpu.memory_space<vmem>>, vector<64x128xf32>
    tpu.vector_store %arg10[%c0_5, %c0_6], %8 {strides = array<i32>} : memref<64x128xf32, #tpu.memory_space<vmem>>, vector<64x128xf32>,
    %c0_7 = arith.constant 0 : index
    %c0_8 = arith.constant 0 : index
    %10 = vector.load %arg2[%c0_7, %c0_8] : memref<128x128xbf16, #tpu.memory_space<vmem>>, vector<128x128xbf16>
    %c0_9 = arith.constant 0 : index
    %c0_10 = arith.constant 0 : index
    %11 = vector.load %arg4[%c0_9, %c0_10] : memref<128x128xbf16, #tpu.memory_space<vmem>>, vector<128x128xbf16>
    %c0_11 = arith.constant 0 : index
    %c0_12 = arith.constant 0 : index
    %12 = vector.load %arg6[%c0_11, %c0_12] : memref<1x128xf32, #tpu.memory_space<vmem>>, vector<1x128xf32>
    %cst_13 = arith.constant 0.000000e+00 : f32
    %13 = vector.broadcast %cst_13 : f32 to vector<8x128xf32>
    %cst_14 = arith.constant 0.000000e+00 : f32
    %14 = vector.broadcast %cst_14 : f32 to vector<8x128xf32>
    %c0_15 = arith.constant 0 : index
    %c0_16 = arith.constant 0 : index
    %15 = vector.load %arg10[%c0_15, %c0_16] : memref<64x128xf32, #tpu.memory_space<vmem>>, vector<8x128xf32>
    %16 = arith.truncf %13 : vector<8x128xf32> to vector<8x128xbf16>
    %cst_17 = arith.constant dense<0.000000e+00> : vector<8x128xf32>
    %17 = tpu.matmul %16, %10, %cst_17 {dimension_numbers = #tpu.dot_dimension_numbers<[1], [0], [0], [1], [0, 0, 1, 1], [], []>} : vector<8x128xbf16>, vector<128x128xbf16>, vector<8x128xf32> -> vector<8x128xf32>
    %18 = arith.addf %15, %17 : vector<8x128xf32>
    %cst_18 = arith.constant 5.000000e-01 : f32
    %19 = vector.broadcast %cst_18 : f32 to vector<8x128xf32>
    %20 = arith.mulf %19, %18 : vector<8x128xf32>
    %21 = math.tanh %20 : vector<8x128xf32>
    %cst_19 = arith.constant 1.000000e+00 : f32
    %22 = vector.broadcast %cst_19 : f32 to vector<8x128xf32>
    %23 = arith.addf %21, %22 : vector<8x128xf32>
    %cst_20 = arith.constant 5.000000e-01 : f32
    %24 = vector.broadcast %cst_20 : f32 to vector<8x128xf32>
    %25 = arith.mulf %24, %23 : vector<8x128xf32>
    %26 = math.tanh %18 : vector<8x128xf32>
    %27 = arith.select %2, %25, %26 : vector<8x128xi1>, vector<8x128xf32>
    %c96_i32_21 = arith.constant 96 : i32
    %28 = tpu.dynamic_rotate %27 by %c96_i32_21 dim 1 : vector<8x128xf32>, i32 -> vector<8x128xf32>
    %c64_i32 = arith.constant 64 : i32
    %29 = tpu.dynamic_rotate %27 by %c64_i32 dim 1 : vector<8x128xf32>, i32 -> vector<8x128xf32>
    %c32_i32 = arith.constant 32 : i32
    %30 = tpu.dynamic_rotate %27 by %c32_i32 dim 1 : vector<8x128xf32>, i32 -> vector<8x128xf32>
    %31 = arith.mulf %28, %14 : vector<8x128xf32>
    %32 = arith.mulf %27, %30 : vector<8x128xf32>
    %33 = arith.addf %31, %32 : vector<8x128xf32>
    %34 = math.tanh %33 : vector<8x128xf32>
    %35 = arith.mulf %29, %34 : vector<8x128xf32>
    %36 = arith.truncf %35 : vector<8x128xf32> to vector<8x128xbf16>
    %cst_22 = arith.constant dense<0.000000e+00> : vector<8x128xf32>
    %37 = tpu.matmul %36, %11, %cst_22 {dimension_numbers = #tpu.dot_dimension_numbers<[1], [0], [0], [1], [0, 0, 1, 1], [], []>} : vector<8x128xbf16>, vector<128x128xbf16>, vector<8x128xf32> -> vector<8x128xf32>
    %38 = vector.broadcast %12 : vector<1x128xf32> to vector<8x128xf32>
    %39 = arith.addf %37, %38 : vector<8x128xf32>
    %c0_23 = arith.constant 0 : index
    %c0_24 = arith.constant 0 : index
    %40 = vector.load %arg10[%c0_23, %c0_24] : memref<64x128xf32, #tpu.memory_space<vmem>>, vector<8x128xf32>
    tpu.vector_store %arg10[%c0_23, %c0_24], %39 {strides = array<i32>} : memref<64x128xf32, #tpu.memory_space<vmem>>, vector<8x128xf32>,
    %c8 = arith.constant 8 : index
    %c0_25 = arith.constant 0 : index
    %41 = vector.load %arg10[%c8, %c0_25] : memref<64x128xf32, #tpu.memory_space<vmem>>, vector<8x128xf32>
    %42 = arith.truncf %35 : vector<8x128xf32> to vector<8x128xbf16>
    %cst_26 = arith.constant dense<0.000000e+00> : vector<8x128xf32>
    %43 = tpu.matmul %42, %10, %cst_26 {dimension_numbers = #tpu.dot_dimension_numbers<[1], [0], [0], [1], [0, 0, 1, 1], [], []>} : vector<8x128xbf16>, vector<128x128xbf16>, vector<8x128xf32> -> vector<8x128xf32>
    %44 = arith.addf %41, %43 : vector<8x128xf32>
    %cst_27 = arith.constant 5.000000e-01 : f32
    %45 = vector.broadcast %cst_27 : f32 to vector<8x128xf32>
    %46 = arith.mulf %45, %44 : vector<8x128xf32>
    %47 = math.tanh %46 : vector<8x128xf32>
    %cst_28 = arith.constant 1.000000e+00 : f32
    %48 = vector.broadcast %cst_28 : f32 to vector<8x128xf32>
    %49 = arith.addf %47, %48 : vector<8x128xf32>
    %cst_29 = arith.constant 5.000000e-01 : f32
    %50 = vector.broadcast %cst_29 : f32 to vector<8x128xf32>
    %51 = arith.mulf %50, %49 : vector<8x128xf32>
    %52 = math.tanh %44 : vector<8x128xf32>
    %53 = arith.select %2, %51, %52 : vector<8x128xi1>, vector<8x128xf32>
    %c96_i32_30 = arith.constant 96 : i32
    %54 = tpu.dynamic_rotate %53 by %c96_i32_30 dim 1 : vector<8x128xf32>, i32 -> vector<8x128xf32>
    %c64_i32_31 = arith.constant 64 : i32
    %55 = tpu.dynamic_rotate %53 by %c64_i32_31 dim 1 : vector<8x128xf32>, i32 -> vector<8x128xf32>
    %c32_i32_32 = arith.constant 32 : i32
    %56 = tpu.dynamic_rotate %53 by %c32_i32_32 dim 1 : vector<8x128xf32>, i32 -> vector<8x128xf32>
    %57 = arith.mulf %54, %33 : vector<8x128xf32>
    %58 = arith.mulf %53, %56 : vector<8x128xf32>
    %59 = arith.addf %57, %58 : vector<8x128xf32>
    %60 = math.tanh %59 : vector<8x128xf32>
    %61 = arith.mulf %55, %60 : vector<8x128xf32>
    %62 = arith.truncf %61 : vector<8x128xf32> to vector<8x128xbf16>
    %cst_33 = arith.constant dense<0.000000e+00> : vector<8x128xf32>
    %63 = tpu.matmul %62, %11, %cst_33 {dimension_numbers = #tpu.dot_dimension_numbers<[1], [0], [0], [1], [0, 0, 1, 1], [], []>} : vector<8x128xbf16>, vector<128x128xbf16>, vector<8x128xf32> -> vector<8x128xf32>
    %64 = vector.broadcast %12 : vector<1x128xf32> to vector<8x128xf32>
    %65 = arith.addf %63, %64 : vector<8x128xf32>
    %c8_34 = arith.constant 8 : index
    %c0_35 = arith.constant 0 : index
    %66 = vector.load %arg10[%c8_34, %c0_35] : memref<64x128xf32, #tpu.memory_space<vmem>>, vector<8x128xf32>
    tpu.vector_store %arg10[%c8_34, %c0_35], %65 {strides = array<i32>} : memref<64x128xf32, #tpu.memory_space<vmem>>, vector<8x128xf32>,
    %c16 = arith.constant 16 : index
    %c0_36 = arith.constant 0 : index
    %67 = vector.load %arg10[%c16, %c0_36] : memref<64x128xf32, #tpu.memory_space<vmem>>, vector<8x128xf32>
    %68 = arith.truncf %61 : vector<8x128xf32> to vector<8x128xbf16>
    %cst_37 = arith.constant dense<0.000000e+00> : vector<8x128xf32>
    %69 = tpu.matmul %68, %10, %cst_37 {dimension_numbers = #tpu.dot_dimension_numbers<[1], [0], [0], [1], [0, 0, 1, 1], [], []>} : vector<8x128xbf16>, vector<128x128xbf16>, vector<8x128xf32> -> vector<8x128xf32>
    %70 = arith.addf %67, %69 : vector<8x128xf32>
    %cst_38 = arith.constant 5.000000e-01 : f32
    %71 = vector.broadcast %cst_38 : f32 to vector<8x128xf32>
    %72 = arith.mulf %71, %70 : vector<8x128xf32>
    %73 = math.tanh %72 : vector<8x128xf32>
    %cst_39 = arith.constant 1.000000e+00 : f32
    %74 = vector.broadcast %cst_39 : f32 to vector<8x128xf32>
    %75 = arith.addf %73, %74 : vector<8x128xf32>
    %cst_40 = arith.constant 5.000000e-01 : f32
    %76 = vector.broadcast %cst_40 : f32 to vector<8x128xf32>
    %77 = arith.mulf %76, %75 : vector<8x128xf32>
    %78 = math.tanh %70 : vector<8x128xf32>
    %79 = arith.select %2, %77, %78 : vector<8x128xi1>, vector<8x128xf32>
    %c96_i32_41 = arith.constant 96 : i32
    %80 = tpu.dynamic_rotate %79 by %c96_i32_41 dim 1 : vector<8x128xf32>, i32 -> vector<8x128xf32>
    %c64_i32_42 = arith.constant 64 : i32
    %81 = tpu.dynamic_rotate %79 by %c64_i32_42 dim 1 : vector<8x128xf32>, i32 -> vector<8x128xf32>
    %c32_i32_43 = arith.constant 32 : i32
    %82 = tpu.dynamic_rotate %79 by %c32_i32_43 dim 1 : vector<8x128xf32>, i32 -> vector<8x128xf32>
    %83 = arith.mulf %80, %59 : vector<8x128xf32>
    %84 = arith.mulf %79, %82 : vector<8x128xf32>
    %85 = arith.addf %83, %84 : vector<8x128xf32>
    %86 = math.tanh %85 : vector<8x128xf32>
    %87 = arith.mulf %81, %86 : vector<8x128xf32>
    %88 = arith.truncf %87 : vector<8x128xf32> to vector<8x128xbf16>
    %cst_44 = arith.constant dense<0.000000e+00> : vector<8x128xf32>
    %89 = tpu.matmul %88, %11, %cst_44 {dimension_numbers = #tpu.dot_dimension_numbers<[1], [0], [0], [1], [0, 0, 1, 1], [], []>} : vector<8x128xbf16>, vector<128x128xbf16>, vector<8x128xf32> -> vector<8x128xf32>
    %90 = vector.broadcast %12 : vector<1x128xf32> to vector<8x128xf32>
    %91 = arith.addf %89, %90 : vector<8x128xf32>
    %c16_45 = arith.constant 16 : index
    %c0_46 = arith.constant 0 : index
    %92 = vector.load %arg10[%c16_45, %c0_46] : memref<64x128xf32, #tpu.memory_space<vmem>>, vector<8x128xf32>
    tpu.vector_store %arg10[%c16_45, %c0_46], %91 {strides = array<i32>} : memref<64x128xf32, #tpu.memory_space<vmem>>, vector<8x128xf32>,
    %c24 = arith.constant 24 : index
    %c0_47 = arith.constant 0 : index
    %93 = vector.load %arg10[%c24, %c0_47] : memref<64x128xf32, #tpu.memory_space<vmem>>, vector<8x128xf32>
    %94 = arith.truncf %87 : vector<8x128xf32> to vector<8x128xbf16>
    %cst_48 = arith.constant dense<0.000000e+00> : vector<8x128xf32>
    %95 = tpu.matmul %94, %10, %cst_48 {dimension_numbers = #tpu.dot_dimension_numbers<[1], [0], [0], [1], [0, 0, 1, 1], [], []>} : vector<8x128xbf16>, vector<128x128xbf16>, vector<8x128xf32> -> vector<8x128xf32>
    %96 = arith.addf %93, %95 : vector<8x128xf32>
    %cst_49 = arith.constant 5.000000e-01 : f32
    %97 = vector.broadcast %cst_49 : f32 to vector<8x128xf32>
    %98 = arith.mulf %97, %96 : vector<8x128xf32>
    %99 = math.tanh %98 : vector<8x128xf32>
    %cst_50 = arith.constant 1.000000e+00 : f32
    %100 = vector.broadcast %cst_50 : f32 to vector<8x128xf32>
    %101 = arith.addf %99, %100 : vector<8x128xf32>
    %cst_51 = arith.constant 5.000000e-01 : f32
    %102 = vector.broadcast %cst_51 : f32 to vector<8x128xf32>
    %103 = arith.mulf %102, %101 : vector<8x128xf32>
    %104 = math.tanh %96 : vector<8x128xf32>
    %105 = arith.select %2, %103, %104 : vector<8x128xi1>, vector<8x128xf32>
    %c96_i32_52 = arith.constant 96 : i32
    %106 = tpu.dynamic_rotate %105 by %c96_i32_52 dim 1 : vector<8x128xf32>, i32 -> vector<8x128xf32>
    %c64_i32_53 = arith.constant 64 : i32
    %107 = tpu.dynamic_rotate %105 by %c64_i32_53 dim 1 : vector<8x128xf32>, i32 -> vector<8x128xf32>
    %c32_i32_54 = arith.constant 32 : i32
    %108 = tpu.dynamic_rotate %105 by %c32_i32_54 dim 1 : vector<8x128xf32>, i32 -> vector<8x128xf32>
    %109 = arith.mulf %106, %85 : vector<8x128xf32>
    %110 = arith.mulf %105, %108 : vector<8x128xf32>
    %111 = arith.addf %109, %110 : vector<8x128xf32>
    %112 = math.tanh %111 : vector<8x128xf32>
    %113 = arith.mulf %107, %112 : vector<8x128xf32>
    %114 = arith.truncf %113 : vector<8x128xf32> to vector<8x128xbf16>
    %cst_55 = arith.constant dense<0.000000e+00> : vector<8x128xf32>
    %115 = tpu.matmul %114, %11, %cst_55 {dimension_numbers = #tpu.dot_dimension_numbers<[1], [0], [0], [1], [0, 0, 1, 1], [], []>} : vector<8x128xbf16>, vector<128x128xbf16>, vector<8x128xf32> -> vector<8x128xf32>
    %116 = vector.broadcast %12 : vector<1x128xf32> to vector<8x128xf32>
    %117 = arith.addf %115, %116 : vector<8x128xf32>
    %c24_56 = arith.constant 24 : index
    %c0_57 = arith.constant 0 : index
    %118 = vector.load %arg10[%c24_56, %c0_57] : memref<64x128xf32, #tpu.memory_space<vmem>>, vector<8x128xf32>
    tpu.vector_store %arg10[%c24_56, %c0_57], %117 {strides = array<i32>} : memref<64x128xf32, #tpu.memory_space<vmem>>, vector<8x128xf32>,
    %c32 = arith.constant 32 : index
    %c0_58 = arith.constant 0 : index
    %119 = vector.load %arg10[%c32, %c0_58] : memref<64x128xf32, #tpu.memory_space<vmem>>, vector<8x128xf32>
    %120 = arith.truncf %113 : vector<8x128xf32> to vector<8x128xbf16>
    %cst_59 = arith.constant dense<0.000000e+00> : vector<8x128xf32>
    %121 = tpu.matmul %120, %10, %cst_59 {dimension_numbers = #tpu.dot_dimension_numbers<[1], [0], [0], [1], [0, 0, 1, 1], [], []>} : vector<8x128xbf16>, vector<128x128xbf16>, vector<8x128xf32> -> vector<8x128xf32>
    %122 = arith.addf %119, %121 : vector<8x128xf32>
    %cst_60 = arith.constant 5.000000e-01 : f32
    %123 = vector.broadcast %cst_60 : f32 to vector<8x128xf32>
    %124 = arith.mulf %123, %122 : vector<8x128xf32>
    %125 = math.tanh %124 : vector<8x128xf32>
    %cst_61 = arith.constant 1.000000e+00 : f32
    %126 = vector.broadcast %cst_61 : f32 to vector<8x128xf32>
    %127 = arith.addf %125, %126 : vector<8x128xf32>
    %cst_62 = arith.constant 5.000000e-01 : f32
    %128 = vector.broadcast %cst_62 : f32 to vector<8x128xf32>
    %129 = arith.mulf %128, %127 : vector<8x128xf32>
    %130 = math.tanh %122 : vector<8x128xf32>
    %131 = arith.select %2, %129, %130 : vector<8x128xi1>, vector<8x128xf32>
    %c96_i32_63 = arith.constant 96 : i32
    %132 = tpu.dynamic_rotate %131 by %c96_i32_63 dim 1 : vector<8x128xf32>, i32 -> vector<8x128xf32>
    %c64_i32_64 = arith.constant 64 : i32
    %133 = tpu.dynamic_rotate %131 by %c64_i32_64 dim 1 : vector<8x128xf32>, i32 -> vector<8x128xf32>
    %c32_i32_65 = arith.constant 32 : i32
    %134 = tpu.dynamic_rotate %131 by %c32_i32_65 dim 1 : vector<8x128xf32>, i32 -> vector<8x128xf32>
    %135 = arith.mulf %132, %111 : vector<8x128xf32>
    %136 = arith.mulf %131, %134 : vector<8x128xf32>
    %137 = arith.addf %135, %136 : vector<8x128xf32>
    %138 = math.tanh %137 : vector<8x128xf32>
    %139 = arith.mulf %133, %138 : vector<8x128xf32>
    %140 = arith.truncf %139 : vector<8x128xf32> to vector<8x128xbf16>
    %cst_66 = arith.constant dense<0.000000e+00> : vector<8x128xf32>
    %141 = tpu.matmul %140, %11, %cst_66 {dimension_numbers = #tpu.dot_dimension_numbers<[1], [0], [0], [1], [0, 0, 1, 1], [], []>} : vector<8x128xbf16>, vector<128x128xbf16>, vector<8x128xf32> -> vector<8x128xf32>
    %142 = vector.broadcast %12 : vector<1x128xf32> to vector<8x128xf32>
    %143 = arith.addf %141, %142 : vector<8x128xf32>
    %c32_67 = arith.constant 32 : index
    %c0_68 = arith.constant 0 : index
    %144 = vector.load %arg10[%c32_67, %c0_68] : memref<64x128xf32, #tpu.memory_space<vmem>>, vector<8x128xf32>
    tpu.vector_store %arg10[%c32_67, %c0_68], %143 {strides = array<i32>} : memref<64x128xf32, #tpu.memory_space<vmem>>, vector<8x128xf32>,
    %c40 = arith.constant 40 : index
    %c0_69 = arith.constant 0 : index
    %145 = vector.load %arg10[%c40, %c0_69] : memref<64x128xf32, #tpu.memory_space<vmem>>, vector<8x128xf32>
    %146 = arith.truncf %139 : vector<8x128xf32> to vector<8x128xbf16>
    %cst_70 = arith.constant dense<0.000000e+00> : vector<8x128xf32>
    %147 = tpu.matmul %146, %10, %cst_70 {dimension_numbers = #tpu.dot_dimension_numbers<[1], [0], [0], [1], [0, 0, 1, 1], [], []>} : vector<8x128xbf16>, vector<128x128xbf16>, vector<8x128xf32> -> vector<8x128xf32>
    %148 = arith.addf %145, %147 : vector<8x128xf32>
    %cst_71 = arith.constant 5.000000e-01 : f32
    %149 = vector.broadcast %cst_71 : f32 to vector<8x128xf32>
    %150 = arith.mulf %149, %148 : vector<8x128xf32>
    %151 = math.tanh %150 : vector<8x128xf32>
    %cst_72 = arith.constant 1.000000e+00 : f32
    %152 = vector.broadcast %cst_72 : f32 to vector<8x128xf32>
    %153 = arith.addf %151, %152 : vector<8x128xf32>
    %cst_73 = arith.constant 5.000000e-01 : f32
    %154 = vector.broadcast %cst_73 : f32 to vector<8x128xf32>
    %155 = arith.mulf %154, %153 : vector<8x128xf32>
    %156 = math.tanh %148 : vector<8x128xf32>
    %157 = arith.select %2, %155, %156 : vector<8x128xi1>, vector<8x128xf32>
    %c96_i32_74 = arith.constant 96 : i32
    %158 = tpu.dynamic_rotate %157 by %c96_i32_74 dim 1 : vector<8x128xf32>, i32 -> vector<8x128xf32>
    %c64_i32_75 = arith.constant 64 : i32
    %159 = tpu.dynamic_rotate %157 by %c64_i32_75 dim 1 : vector<8x128xf32>, i32 -> vector<8x128xf32>
    %c32_i32_76 = arith.constant 32 : i32
    %160 = tpu.dynamic_rotate %157 by %c32_i32_76 dim 1 : vector<8x128xf32>, i32 -> vector<8x128xf32>
    %161 = arith.mulf %158, %137 : vector<8x128xf32>
    %162 = arith.mulf %157, %160 : vector<8x128xf32>
    %163 = arith.addf %161, %162 : vector<8x128xf32>
    %164 = math.tanh %163 : vector<8x128xf32>
    %165 = arith.mulf %159, %164 : vector<8x128xf32>
    %166 = arith.truncf %165 : vector<8x128xf32> to vector<8x128xbf16>
    %cst_77 = arith.constant dense<0.000000e+00> : vector<8x128xf32>
    %167 = tpu.matmul %166, %11, %cst_77 {dimension_numbers = #tpu.dot_dimension_numbers<[1], [0], [0], [1], [0, 0, 1, 1], [], []>} : vector<8x128xbf16>, vector<128x128xbf16>, vector<8x128xf32> -> vector<8x128xf32>
    %168 = vector.broadcast %12 : vector<1x128xf32> to vector<8x128xf32>
    %169 = arith.addf %167, %168 : vector<8x128xf32>
    %c40_78 = arith.constant 40 : index
    %c0_79 = arith.constant 0 : index
    %170 = vector.load %arg10[%c40_78, %c0_79] : memref<64x128xf32, #tpu.memory_space<vmem>>, vector<8x128xf32>
    tpu.vector_store %arg10[%c40_78, %c0_79], %169 {strides = array<i32>} : memref<64x128xf32, #tpu.memory_space<vmem>>, vector<8x128xf32>,
    %c48 = arith.constant 48 : index
    %c0_80 = arith.constant 0 : index
    %171 = vector.load %arg10[%c48, %c0_80] : memref<64x128xf32, #tpu.memory_space<vmem>>, vector<8x128xf32>
    %172 = arith.truncf %165 : vector<8x128xf32> to vector<8x128xbf16>
    %cst_81 = arith.constant dense<0.000000e+00> : vector<8x128xf32>
    %173 = tpu.matmul %172, %10, %cst_81 {dimension_numbers = #tpu.dot_dimension_numbers<[1], [0], [0], [1], [0, 0, 1, 1], [], []>} : vector<8x128xbf16>, vector<128x128xbf16>, vector<8x128xf32> -> vector<8x128xf32>
    %174 = arith.addf %171, %173 : vector<8x128xf32>
    %cst_82 = arith.constant 5.000000e-01 : f32
    %175 = vector.broadcast %cst_82 : f32 to vector<8x128xf32>
    %176 = arith.mulf %175, %174 : vector<8x128xf32>
    %177 = math.tanh %176 : vector<8x128xf32>
    %cst_83 = arith.constant 1.000000e+00 : f32
    %178 = vector.broadcast %cst_83 : f32 to vector<8x128xf32>
    %179 = arith.addf %177, %178 : vector<8x128xf32>
    %cst_84 = arith.constant 5.000000e-01 : f32
    %180 = vector.broadcast %cst_84 : f32 to vector<8x128xf32>
    %181 = arith.mulf %180, %179 : vector<8x128xf32>
    %182 = math.tanh %174 : vector<8x128xf32>
    %183 = arith.select %2, %181, %182 : vector<8x128xi1>, vector<8x128xf32>
    %c96_i32_85 = arith.constant 96 : i32
    %184 = tpu.dynamic_rotate %183 by %c96_i32_85 dim 1 : vector<8x128xf32>, i32 -> vector<8x128xf32>
    %c64_i32_86 = arith.constant 64 : i32
    %185 = tpu.dynamic_rotate %183 by %c64_i32_86 dim 1 : vector<8x128xf32>, i32 -> vector<8x128xf32>
    %c32_i32_87 = arith.constant 32 : i32
    %186 = tpu.dynamic_rotate %183 by %c32_i32_87 dim 1 : vector<8x128xf32>, i32 -> vector<8x128xf32>
    %187 = arith.mulf %184, %163 : vector<8x128xf32>
    %188 = arith.mulf %183, %186 : vector<8x128xf32>
    %189 = arith.addf %187, %188 : vector<8x128xf32>
    %190 = math.tanh %189 : vector<8x128xf32>
    %191 = arith.mulf %185, %190 : vector<8x128xf32>
    %192 = arith.truncf %191 : vector<8x128xf32> to vector<8x128xbf16>
    %cst_88 = arith.constant dense<0.000000e+00> : vector<8x128xf32>
    %193 = tpu.matmul %192, %11, %cst_88 {dimension_numbers = #tpu.dot_dimension_numbers<[1], [0], [0], [1], [0, 0, 1, 1], [], []>} : vector<8x128xbf16>, vector<128x128xbf16>, vector<8x128xf32> -> vector<8x128xf32>
    %194 = vector.broadcast %12 : vector<1x128xf32> to vector<8x128xf32>
    %195 = arith.addf %193, %194 : vector<8x128xf32>
    %c48_89 = arith.constant 48 : index
    %c0_90 = arith.constant 0 : index
    %196 = vector.load %arg10[%c48_89, %c0_90] : memref<64x128xf32, #tpu.memory_space<vmem>>, vector<8x128xf32>
    tpu.vector_store %arg10[%c48_89, %c0_90], %195 {strides = array<i32>} : memref<64x128xf32, #tpu.memory_space<vmem>>, vector<8x128xf32>,
    %c56 = arith.constant 56 : index
    %c0_91 = arith.constant 0 : index
    %197 = vector.load %arg10[%c56, %c0_91] : memref<64x128xf32, #tpu.memory_space<vmem>>, vector<8x128xf32>
    %198 = arith.truncf %191 : vector<8x128xf32> to vector<8x128xbf16>
    %cst_92 = arith.constant dense<0.000000e+00> : vector<8x128xf32>
    %199 = tpu.matmul %198, %10, %cst_92 {dimension_numbers = #tpu.dot_dimension_numbers<[1], [0], [0], [1], [0, 0, 1, 1], [], []>} : vector<8x128xbf16>, vector<128x128xbf16>, vector<8x128xf32> -> vector<8x128xf32>
    %200 = arith.addf %197, %199 : vector<8x128xf32>
    %cst_93 = arith.constant 5.000000e-01 : f32
    %201 = vector.broadcast %cst_93 : f32 to vector<8x128xf32>
    %202 = arith.mulf %201, %200 : vector<8x128xf32>
    %203 = math.tanh %202 : vector<8x128xf32>
    %cst_94 = arith.constant 1.000000e+00 : f32
    %204 = vector.broadcast %cst_94 : f32 to vector<8x128xf32>
    %205 = arith.addf %203, %204 : vector<8x128xf32>
    %cst_95 = arith.constant 5.000000e-01 : f32
    %206 = vector.broadcast %cst_95 : f32 to vector<8x128xf32>
    %207 = arith.mulf %206, %205 : vector<8x128xf32>
    %208 = math.tanh %200 : vector<8x128xf32>
    %209 = arith.select %2, %207, %208 : vector<8x128xi1>, vector<8x128xf32>
    %c96_i32_96 = arith.constant 96 : i32
    %210 = tpu.dynamic_rotate %209 by %c96_i32_96 dim 1 : vector<8x128xf32>, i32 -> vector<8x128xf32>
    %c64_i32_97 = arith.constant 64 : i32
    %211 = tpu.dynamic_rotate %209 by %c64_i32_97 dim 1 : vector<8x128xf32>, i32 -> vector<8x128xf32>
    %c32_i32_98 = arith.constant 32 : i32
    %212 = tpu.dynamic_rotate %209 by %c32_i32_98 dim 1 : vector<8x128xf32>, i32 -> vector<8x128xf32>
    %213 = arith.mulf %210, %189 : vector<8x128xf32>
    %214 = arith.mulf %209, %212 : vector<8x128xf32>
    %215 = arith.addf %213, %214 : vector<8x128xf32>
    %216 = math.tanh %215 : vector<8x128xf32>
    %217 = arith.mulf %211, %216 : vector<8x128xf32>
    %218 = arith.truncf %217 : vector<8x128xf32> to vector<8x128xbf16>
    %cst_99 = arith.constant dense<0.000000e+00> : vector<8x128xf32>
    %219 = tpu.matmul %218, %11, %cst_99 {dimension_numbers = #tpu.dot_dimension_numbers<[1], [0], [0], [1], [0, 0, 1, 1], [], []>} : vector<8x128xbf16>, vector<128x128xbf16>, vector<8x128xf32> -> vector<8x128xf32>
    %220 = vector.broadcast %12 : vector<1x128xf32> to vector<8x128xf32>
    %221 = arith.addf %219, %220 : vector<8x128xf32>
    %c56_100 = arith.constant 56 : index
    %c0_101 = arith.constant 0 : index
    %222 = vector.load %arg10[%c56_100, %c0_101] : memref<64x128xf32, #tpu.memory_space<vmem>>, vector<8x128xf32>
    tpu.vector_store %arg10[%c56_100, %c0_101], %221 {strides = array<i32>} : memref<64x128xf32, #tpu.memory_space<vmem>>, vector<8x128xf32>,
    %c0_102 = arith.constant 0 : index
    %c0_103 = arith.constant 0 : index
    %223 = vector.load %arg5[%c0_102, %c0_103] : memref<128x128xbf16, #tpu.memory_space<vmem>>, vector<128x128xbf16>
    %cst_104 = arith.constant 0.000000e+00 : f32
    %224 = vector.broadcast %cst_104 : f32 to vector<8x128xf32>
    %cst_105 = arith.constant 0.000000e+00 : f32
    %225 = vector.broadcast %cst_105 : f32 to vector<8x128xf32>
    %c0_106 = arith.constant 0 : index
    %c0_107 = arith.constant 0 : index
    %226 = vector.load %arg10[%c0_106, %c0_107] : memref<64x128xf32, #tpu.memory_space<vmem>>, vector<8x128xf32>
    %227 = arith.truncf %224 : vector<8x128xf32> to vector<8x128xbf16>
    %cst_108 = arith.constant dense<0.000000e+00> : vector<8x128xf32>
    %228 = tpu.matmul %227, %223, %cst_108 {dimension_numbers = #tpu.dot_dimension_numbers<[1], [0], [0], [1], [0, 0, 1, 1], [], []>} : vector<8x128xbf16>, vector<128x128xbf16>, vector<8x128xf32> -> vector<8x128xf32>
    %229 = arith.addf %226, %228 : vector<8x128xf32>
    %cst_109 = arith.constant 5.000000e-01 : f32
    %230 = vector.broadcast %cst_109 : f32 to vector<8x128xf32>
    %231 = arith.mulf %230, %229 : vector<8x128xf32>
    %232 = math.tanh %231 : vector<8x128xf32>
    %cst_110 = arith.constant 1.000000e+00 : f32
    %233 = vector.broadcast %cst_110 : f32 to vector<8x128xf32>
    %234 = arith.addf %232, %233 : vector<8x128xf32>
    %cst_111 = arith.constant 5.000000e-01 : f32
    %235 = vector.broadcast %cst_111 : f32 to vector<8x128xf32>
    %236 = arith.mulf %235, %234 : vector<8x128xf32>
    %237 = math.tanh %229 : vector<8x128xf32>
    %238 = arith.select %2, %236, %237 : vector<8x128xi1>, vector<8x128xf32>
    %c96_i32_112 = arith.constant 96 : i32
    %239 = tpu.dynamic_rotate %238 by %c96_i32_112 dim 1 : vector<8x128xf32>, i32 -> vector<8x128xf32>
    %c64_i32_113 = arith.constant 64 : i32
    %240 = tpu.dynamic_rotate %238 by %c64_i32_113 dim 1 : vector<8x128xf32>, i32 -> vector<8x128xf32>
    %c32_i32_114 = arith.constant 32 : i32
    %241 = tpu.dynamic_rotate %238 by %c32_i32_114 dim 1 : vector<8x128xf32>, i32 -> vector<8x128xf32>
    %242 = arith.mulf %239, %225 : vector<8x128xf32>
    %243 = arith.mulf %238, %241 : vector<8x128xf32>
    %244 = arith.addf %242, %243 : vector<8x128xf32>
    %245 = math.tanh %244 : vector<8x128xf32>
    %246 = arith.mulf %240, %245 : vector<8x128xf32>
    %c8_115 = arith.constant 8 : index
    %c0_116 = arith.constant 0 : index
    %247 = vector.load %arg10[%c8_115, %c0_116] : memref<64x128xf32, #tpu.memory_space<vmem>>, vector<8x128xf32>
    %248 = arith.truncf %246 : vector<8x128xf32> to vector<8x128xbf16>
    %cst_117 = arith.constant dense<0.000000e+00> : vector<8x128xf32>
    %249 = tpu.matmul %248, %223, %cst_117 {dimension_numbers = #tpu.dot_dimension_numbers<[1], [0], [0], [1], [0, 0, 1, 1], [], []>} : vector<8x128xbf16>, vector<128x128xbf16>, vector<8x128xf32> -> vector<8x128xf32>
    %250 = arith.addf %247, %249 : vector<8x128xf32>
    %cst_118 = arith.constant 5.000000e-01 : f32
    %251 = vector.broadcast %cst_118 : f32 to vector<8x128xf32>
    %252 = arith.mulf %251, %250 : vector<8x128xf32>
    %253 = math.tanh %252 : vector<8x128xf32>
    %cst_119 = arith.constant 1.000000e+00 : f32
    %254 = vector.broadcast %cst_119 : f32 to vector<8x128xf32>
    %255 = arith.addf %253, %254 : vector<8x128xf32>
    %cst_120 = arith.constant 5.000000e-01 : f32
    %256 = vector.broadcast %cst_120 : f32 to vector<8x128xf32>
    %257 = arith.mulf %256, %255 : vector<8x128xf32>
    %258 = math.tanh %250 : vector<8x128xf32>
    %259 = arith.select %2, %257, %258 : vector<8x128xi1>, vector<8x128xf32>
    %c96_i32_121 = arith.constant 96 : i32
    %260 = tpu.dynamic_rotate %259 by %c96_i32_121 dim 1 : vector<8x128xf32>, i32 -> vector<8x128xf32>
    %c64_i32_122 = arith.constant 64 : i32
    %261 = tpu.dynamic_rotate %259 by %c64_i32_122 dim 1 : vector<8x128xf32>, i32 -> vector<8x128xf32>
    %c32_i32_123 = arith.constant 32 : i32
    %262 = tpu.dynamic_rotate %259 by %c32_i32_123 dim 1 : vector<8x128xf32>, i32 -> vector<8x128xf32>
    %263 = arith.mulf %260, %244 : vector<8x128xf32>
    %264 = arith.mulf %259, %262 : vector<8x128xf32>
    %265 = arith.addf %263, %264 : vector<8x128xf32>
    %266 = math.tanh %265 : vector<8x128xf32>
    %267 = arith.mulf %261, %266 : vector<8x128xf32>
    %c16_124 = arith.constant 16 : index
    %c0_125 = arith.constant 0 : index
    %268 = vector.load %arg10[%c16_124, %c0_125] : memref<64x128xf32, #tpu.memory_space<vmem>>, vector<8x128xf32>
    %269 = arith.truncf %267 : vector<8x128xf32> to vector<8x128xbf16>
    %cst_126 = arith.constant dense<0.000000e+00> : vector<8x128xf32>
    %270 = tpu.matmul %269, %223, %cst_126 {dimension_numbers = #tpu.dot_dimension_numbers<[1], [0], [0], [1], [0, 0, 1, 1], [], []>} : vector<8x128xbf16>, vector<128x128xbf16>, vector<8x128xf32> -> vector<8x128xf32>
    %271 = arith.addf %268, %270 : vector<8x128xf32>
    %cst_127 = arith.constant 5.000000e-01 : f32
    %272 = vector.broadcast %cst_127 : f32 to vector<8x128xf32>
    %273 = arith.mulf %272, %271 : vector<8x128xf32>
    %274 = math.tanh %273 : vector<8x128xf32>
    %cst_128 = arith.constant 1.000000e+00 : f32
    %275 = vector.broadcast %cst_128 : f32 to vector<8x128xf32>
    %276 = arith.addf %274, %275 : vector<8x128xf32>
    %cst_129 = arith.constant 5.000000e-01 : f32
    %277 = vector.broadcast %cst_129 : f32 to vector<8x128xf32>
    %278 = arith.mulf %277, %276 : vector<8x128xf32>
    %279 = math.tanh %271 : vector<8x128xf32>
    %280 = arith.select %2, %278, %279 : vector<8x128xi1>, vector<8x128xf32>
    %c96_i32_130 = arith.constant 96 : i32
    %281 = tpu.dynamic_rotate %280 by %c96_i32_130 dim 1 : vector<8x128xf32>, i32 -> vector<8x128xf32>
    %c64_i32_131 = arith.constant 64 : i32
    %282 = tpu.dynamic_rotate %280 by %c64_i32_131 dim 1 : vector<8x128xf32>, i32 -> vector<8x128xf32>
    %c32_i32_132 = arith.constant 32 : i32
    %283 = tpu.dynamic_rotate %280 by %c32_i32_132 dim 1 : vector<8x128xf32>, i32 -> vector<8x128xf32>
    %284 = arith.mulf %281, %265 : vector<8x128xf32>
    %285 = arith.mulf %280, %283 : vector<8x128xf32>
    %286 = arith.addf %284, %285 : vector<8x128xf32>
    %287 = math.tanh %286 : vector<8x128xf32>
    %288 = arith.mulf %282, %287 : vector<8x128xf32>
    %c24_133 = arith.constant 24 : index
    %c0_134 = arith.constant 0 : index
    %289 = vector.load %arg10[%c24_133, %c0_134] : memref<64x128xf32, #tpu.memory_space<vmem>>, vector<8x128xf32>
    %290 = arith.truncf %288 : vector<8x128xf32> to vector<8x128xbf16>
    %cst_135 = arith.constant dense<0.000000e+00> : vector<8x128xf32>
    %291 = tpu.matmul %290, %223, %cst_135 {dimension_numbers = #tpu.dot_dimension_numbers<[1], [0], [0], [1], [0, 0, 1, 1], [], []>} : vector<8x128xbf16>, vector<128x128xbf16>, vector<8x128xf32> -> vector<8x128xf32>
    %292 = arith.addf %289, %291 : vector<8x128xf32>
    %cst_136 = arith.constant 5.000000e-01 : f32
    %293 = vector.broadcast %cst_136 : f32 to vector<8x128xf32>
    %294 = arith.mulf %293, %292 : vector<8x128xf32>
    %295 = math.tanh %294 : vector<8x128xf32>
    %cst_137 = arith.constant 1.000000e+00 : f32
    %296 = vector.broadcast %cst_137 : f32 to vector<8x128xf32>
    %297 = arith.addf %295, %296 : vector<8x128xf32>
    %cst_138 = arith.constant 5.000000e-01 : f32
    %298 = vector.broadcast %cst_138 : f32 to vector<8x128xf32>
    %299 = arith.mulf %298, %297 : vector<8x128xf32>
    %300 = math.tanh %292 : vector<8x128xf32>
    %301 = arith.select %2, %299, %300 : vector<8x128xi1>, vector<8x128xf32>
    %c96_i32_139 = arith.constant 96 : i32
    %302 = tpu.dynamic_rotate %301 by %c96_i32_139 dim 1 : vector<8x128xf32>, i32 -> vector<8x128xf32>
    %c64_i32_140 = arith.constant 64 : i32
    %303 = tpu.dynamic_rotate %301 by %c64_i32_140 dim 1 : vector<8x128xf32>, i32 -> vector<8x128xf32>
    %c32_i32_141 = arith.constant 32 : i32
    %304 = tpu.dynamic_rotate %301 by %c32_i32_141 dim 1 : vector<8x128xf32>, i32 -> vector<8x128xf32>
    %305 = arith.mulf %302, %286 : vector<8x128xf32>
    %306 = arith.mulf %301, %304 : vector<8x128xf32>
    %307 = arith.addf %305, %306 : vector<8x128xf32>
    %308 = math.tanh %307 : vector<8x128xf32>
    %309 = arith.mulf %303, %308 : vector<8x128xf32>
    %c32_142 = arith.constant 32 : index
    %c0_143 = arith.constant 0 : index
    %310 = vector.load %arg10[%c32_142, %c0_143] : memref<64x128xf32, #tpu.memory_space<vmem>>, vector<8x128xf32>
    %311 = arith.truncf %309 : vector<8x128xf32> to vector<8x128xbf16>
    %cst_144 = arith.constant dense<0.000000e+00> : vector<8x128xf32>
    %312 = tpu.matmul %311, %223, %cst_144 {dimension_numbers = #tpu.dot_dimension_numbers<[1], [0], [0], [1], [0, 0, 1, 1], [], []>} : vector<8x128xbf16>, vector<128x128xbf16>, vector<8x128xf32> -> vector<8x128xf32>
    %313 = arith.addf %310, %312 : vector<8x128xf32>
    %cst_145 = arith.constant 5.000000e-01 : f32
    %314 = vector.broadcast %cst_145 : f32 to vector<8x128xf32>
    %315 = arith.mulf %314, %313 : vector<8x128xf32>
    %316 = math.tanh %315 : vector<8x128xf32>
    %cst_146 = arith.constant 1.000000e+00 : f32
    %317 = vector.broadcast %cst_146 : f32 to vector<8x128xf32>
    %318 = arith.addf %316, %317 : vector<8x128xf32>
    %cst_147 = arith.constant 5.000000e-01 : f32
    %319 = vector.broadcast %cst_147 : f32 to vector<8x128xf32>
    %320 = arith.mulf %319, %318 : vector<8x128xf32>
    %321 = math.tanh %313 : vector<8x128xf32>
    %322 = arith.select %2, %320, %321 : vector<8x128xi1>, vector<8x128xf32>
    %c96_i32_148 = arith.constant 96 : i32
    %323 = tpu.dynamic_rotate %322 by %c96_i32_148 dim 1 : vector<8x128xf32>, i32 -> vector<8x128xf32>
    %c64_i32_149 = arith.constant 64 : i32
    %324 = tpu.dynamic_rotate %322 by %c64_i32_149 dim 1 : vector<8x128xf32>, i32 -> vector<8x128xf32>
    %c32_i32_150 = arith.constant 32 : i32
    %325 = tpu.dynamic_rotate %322 by %c32_i32_150 dim 1 : vector<8x128xf32>, i32 -> vector<8x128xf32>
    %326 = arith.mulf %323, %307 : vector<8x128xf32>
    %327 = arith.mulf %322, %325 : vector<8x128xf32>
    %328 = arith.addf %326, %327 : vector<8x128xf32>
    %329 = math.tanh %328 : vector<8x128xf32>
    %330 = arith.mulf %324, %329 : vector<8x128xf32>
    %c40_151 = arith.constant 40 : index
    %c0_152 = arith.constant 0 : index
    %331 = vector.load %arg10[%c40_151, %c0_152] : memref<64x128xf32, #tpu.memory_space<vmem>>, vector<8x128xf32>
    %332 = arith.truncf %330 : vector<8x128xf32> to vector<8x128xbf16>
    %cst_153 = arith.constant dense<0.000000e+00> : vector<8x128xf32>
    %333 = tpu.matmul %332, %223, %cst_153 {dimension_numbers = #tpu.dot_dimension_numbers<[1], [0], [0], [1], [0, 0, 1, 1], [], []>} : vector<8x128xbf16>, vector<128x128xbf16>, vector<8x128xf32> -> vector<8x128xf32>
    %334 = arith.addf %331, %333 : vector<8x128xf32>
    %cst_154 = arith.constant 5.000000e-01 : f32
    %335 = vector.broadcast %cst_154 : f32 to vector<8x128xf32>
    %336 = arith.mulf %335, %334 : vector<8x128xf32>
    %337 = math.tanh %336 : vector<8x128xf32>
    %cst_155 = arith.constant 1.000000e+00 : f32
    %338 = vector.broadcast %cst_155 : f32 to vector<8x128xf32>
    %339 = arith.addf %337, %338 : vector<8x128xf32>
    %cst_156 = arith.constant 5.000000e-01 : f32
    %340 = vector.broadcast %cst_156 : f32 to vector<8x128xf32>
    %341 = arith.mulf %340, %339 : vector<8x128xf32>
    %342 = math.tanh %334 : vector<8x128xf32>
    %343 = arith.select %2, %341, %342 : vector<8x128xi1>, vector<8x128xf32>
    %c96_i32_157 = arith.constant 96 : i32
    %344 = tpu.dynamic_rotate %343 by %c96_i32_157 dim 1 : vector<8x128xf32>, i32 -> vector<8x128xf32>
    %c64_i32_158 = arith.constant 64 : i32
    %345 = tpu.dynamic_rotate %343 by %c64_i32_158 dim 1 : vector<8x128xf32>, i32 -> vector<8x128xf32>
    %c32_i32_159 = arith.constant 32 : i32
    %346 = tpu.dynamic_rotate %343 by %c32_i32_159 dim 1 : vector<8x128xf32>, i32 -> vector<8x128xf32>
    %347 = arith.mulf %344, %328 : vector<8x128xf32>
    %348 = arith.mulf %343, %346 : vector<8x128xf32>
    %349 = arith.addf %347, %348 : vector<8x128xf32>
    %350 = math.tanh %349 : vector<8x128xf32>
    %351 = arith.mulf %345, %350 : vector<8x128xf32>
    %c48_160 = arith.constant 48 : index
    %c0_161 = arith.constant 0 : index
    %352 = vector.load %arg10[%c48_160, %c0_161] : memref<64x128xf32, #tpu.memory_space<vmem>>, vector<8x128xf32>
    %353 = arith.truncf %351 : vector<8x128xf32> to vector<8x128xbf16>
    %cst_162 = arith.constant dense<0.000000e+00> : vector<8x128xf32>
    %354 = tpu.matmul %353, %223, %cst_162 {dimension_numbers = #tpu.dot_dimension_numbers<[1], [0], [0], [1], [0, 0, 1, 1], [], []>} : vector<8x128xbf16>, vector<128x128xbf16>, vector<8x128xf32> -> vector<8x128xf32>
    %355 = arith.addf %352, %354 : vector<8x128xf32>
    %cst_163 = arith.constant 5.000000e-01 : f32
    %356 = vector.broadcast %cst_163 : f32 to vector<8x128xf32>
    %357 = arith.mulf %356, %355 : vector<8x128xf32>
    %358 = math.tanh %357 : vector<8x128xf32>
    %cst_164 = arith.constant 1.000000e+00 : f32
    %359 = vector.broadcast %cst_164 : f32 to vector<8x128xf32>
    %360 = arith.addf %358, %359 : vector<8x128xf32>
    %cst_165 = arith.constant 5.000000e-01 : f32
    %361 = vector.broadcast %cst_165 : f32 to vector<8x128xf32>
    %362 = arith.mulf %361, %360 : vector<8x128xf32>
    %363 = math.tanh %355 : vector<8x128xf32>
    %364 = arith.select %2, %362, %363 : vector<8x128xi1>, vector<8x128xf32>
    %c96_i32_166 = arith.constant 96 : i32
    %365 = tpu.dynamic_rotate %364 by %c96_i32_166 dim 1 : vector<8x128xf32>, i32 -> vector<8x128xf32>
    %c64_i32_167 = arith.constant 64 : i32
    %366 = tpu.dynamic_rotate %364 by %c64_i32_167 dim 1 : vector<8x128xf32>, i32 -> vector<8x128xf32>
    %c32_i32_168 = arith.constant 32 : i32
    %367 = tpu.dynamic_rotate %364 by %c32_i32_168 dim 1 : vector<8x128xf32>, i32 -> vector<8x128xf32>
    %368 = arith.mulf %365, %349 : vector<8x128xf32>
    %369 = arith.mulf %364, %367 : vector<8x128xf32>
    %370 = arith.addf %368, %369 : vector<8x128xf32>
    %371 = math.tanh %370 : vector<8x128xf32>
    %372 = arith.mulf %366, %371 : vector<8x128xf32>
    %c56_169 = arith.constant 56 : index
    %c0_170 = arith.constant 0 : index
    %373 = vector.load %arg10[%c56_169, %c0_170] : memref<64x128xf32, #tpu.memory_space<vmem>>, vector<8x128xf32>
    %374 = arith.truncf %372 : vector<8x128xf32> to vector<8x128xbf16>
    %cst_171 = arith.constant dense<0.000000e+00> : vector<8x128xf32>
    %375 = tpu.matmul %374, %223, %cst_171 {dimension_numbers = #tpu.dot_dimension_numbers<[1], [0], [0], [1], [0, 0, 1, 1], [], []>} : vector<8x128xbf16>, vector<128x128xbf16>, vector<8x128xf32> -> vector<8x128xf32>
    %376 = arith.addf %373, %375 : vector<8x128xf32>
    %cst_172 = arith.constant 5.000000e-01 : f32
    %377 = vector.broadcast %cst_172 : f32 to vector<8x128xf32>
    %378 = arith.mulf %377, %376 : vector<8x128xf32>
    %379 = math.tanh %378 : vector<8x128xf32>
    %cst_173 = arith.constant 1.000000e+00 : f32
    %380 = vector.broadcast %cst_173 : f32 to vector<8x128xf32>
    %381 = arith.addf %379, %380 : vector<8x128xf32>
    %cst_174 = arith.constant 5.000000e-01 : f32
    %382 = vector.broadcast %cst_174 : f32 to vector<8x128xf32>
    %383 = arith.mulf %382, %381 : vector<8x128xf32>
    %384 = math.tanh %376 : vector<8x128xf32>
    %385 = arith.select %2, %383, %384 : vector<8x128xi1>, vector<8x128xf32>
    %c96_i32_175 = arith.constant 96 : i32
    %386 = tpu.dynamic_rotate %385 by %c96_i32_175 dim 1 : vector<8x128xf32>, i32 -> vector<8x128xf32>
    %c64_i32_176 = arith.constant 64 : i32
    %387 = tpu.dynamic_rotate %385 by %c64_i32_176 dim 1 : vector<8x128xf32>, i32 -> vector<8x128xf32>
    %c32_i32_177 = arith.constant 32 : i32
    %388 = tpu.dynamic_rotate %385 by %c32_i32_177 dim 1 : vector<8x128xf32>, i32 -> vector<8x128xf32>
    %389 = arith.mulf %386, %370 : vector<8x128xf32>
    %390 = arith.mulf %385, %388 : vector<8x128xf32>
    %391 = arith.addf %389, %390 : vector<8x128xf32>
    %392 = math.tanh %391 : vector<8x128xf32>
    %393 = arith.mulf %387, %392 : vector<8x128xf32>
    %c0_178 = arith.constant 0 : index
    %c0_179 = arith.constant 0 : index
    %394 = vector.load %arg7[%c0_178, %c0_179] : memref<1x128xf32, #tpu.memory_space<vmem>>, vector<1x128xf32>
    %395 = vector.broadcast %394 : vector<1x128xf32> to vector<8x128xf32>
    %396 = arith.mulf %393, %395 : vector<8x128xf32>
    %cst_180 = arith.constant dense<0.000000e+00> : vector<8xf32>
    %397 = vector.multi_reduction <add>, %396, %cst_180 [1] : vector<8x128xf32> to vector<8xf32>
    %398 = vector.shape_cast %397 : vector<8xf32> to vector<8x1xf32>
    %c0_181 = arith.constant 0 : index
    %c0_182 = arith.constant 0 : index
    %399 = vector.load %arg8[%c0_181, %c0_182] : memref<1x1xf32, #tpu.memory_space<vmem>>, vector<1x1xf32>
    %400 = vector.broadcast %399 : vector<1x1xf32> to vector<8x1xf32>
    %401 = arith.addf %398, %400 : vector<8x1xf32>
    %402 = vector.extract_strided_slice %401 {offsets = [0, 0], sizes = [2, 1], strides = [1, 1]} : vector<8x1xf32> to vector<2x1xf32>
    %c0_183 = arith.constant 0 : index
    %c0_184 = arith.constant 0 : index
    %403 = vector.load %arg9[%c0_183, %c0_184] : memref<2x1xf32, #tpu.memory_space<vmem>>, vector<2x1xf32>
    tpu.vector_store %arg9[%c0_183, %c0_184], %402 {strides = array<i32>} : memref<2x1xf32, #tpu.memory_space<vmem>>, vector<2x1xf32>,
    return
  }
}

</mosaic_0001>

<llo_original>
// kernel: lstm_model_forward.1
$region0: #{lstm_model_forward.1}
  #allocation0 [shape = 'u32[]', space=smem, size = 0x4, offset = 0x4, fixed_abs, tag = 'smem constant byte address 0x4 - core index']
  #allocation1 [shape = 'u32[72,128]{1,0:T(1,128)}', space=vmem, size = 0x9000, scoped, tag = 'internal scratch']
  #allocation2 [shape = 'f32[64,128]{1,0:T(8,128)}', space=vmem, size = 0x8000, scoped, tag = 'scratch operand']
  #allocation3 [shape = 'f32[1,1]{1,0:T(1,128)S(1)}', space=vmem, size = 0x200, scoped, tag = 'scoped memory for lstm_model_forward.1']
  %s0 = inlined_call_operand.vmem [shape: bf16[64,8], index: 0, kind: input, shape index: {}]
  %s1 = inlined_call_operand.vmem [shape: bf16[8,128], index: 1, kind: input, shape index: {}]
  %s2 = inlined_call_operand.vmem [shape: bf16[128,128], index: 2, kind: input, shape index: {}]
  %s3 = inlined_call_operand.vmem [shape: f32[1,128], index: 3, kind: input, shape index: {}]
  %s4 = inlined_call_operand.hbm [shape: bf16[128,128], index: 4, kind: input, shape index: {}]
  %s5 = inlined_call_operand.hbm [shape: bf16[128,128], index: 5, kind: input, shape index: {}]
  %s6 = inlined_call_operand.vmem [shape: f32[1,128], index: 6, kind: input, shape index: {}]
  %s7 = inlined_call_operand.vmem [shape: f32[1,128], index: 7, kind: input, shape index: {}]
  %s8 = inlined_call_operand.<no memory space> [shape: f32[1,1], index: 8, kind: input, shape index: {}]
  %s9 = inlined_call_operand.vmem [shape: f32[2,1], index: 9, kind: output, shape index: {}]
  %s10 = sld [smem:[#allocation0]]
  $region54: #{lstm_model_forward.1} parent=0
    _
  %s12 = ssub.s32 1, %s10
  %s13 = scalar_select 0, %s12, %s10
  %v14 = vstv %s8
  %15 = vst [vmem:[#allocation3] sm:$0x1] %v14
  $region1: #{lstm_model_forward.1} parent=0
    #allocation4 [shape = 'u8[32768]{0}', space=vmem, size = 0x8000, scoped, tag = 'input window, operand 4, single buffered']
    #allocation5 [shape = 's32[1]{0}', space=sflag, size = 0x4, scoped, tag = 'scoped memory for lstm_model_forward.1']
    #allocation6 [shape = 'u8[32768]{0}', space=vmem, size = 0x8000, scoped, tag = 'input window, operand 5, single buffered']
    #allocation7 [shape = 's32[1]{0}', space=sflag, size = 0x4, scoped, tag = 'scoped memory for lstm_model_forward.1']
    %16 = vsyncpa [#allocation5], 0
    %17 = vsyncpa [#allocation7], 0
    // Predicated region
    $region2: #{lstm_model_forward.1} parent=1 // pred_check
      _
    $region3: #{lstm_model_forward.1} parent=1 // pred_check_branch
      %19 = sbr.rel (0) target = $region5
    $region4: #{lstm_model_forward.1} parent=1 // pred_region
      _
    $region5: #{lstm_model_forward.1} parent=1 // pred_fallthru
      _
    // Predicated region
    $region6: #{lstm_model_forward.1} parent=1 // pred_check
      _
    $region7: #{lstm_model_forward.1} parent=1 // pred_check_branch
      %21 = sbr.rel (0) target = $region9
    $region8: #{lstm_model_forward.1} parent=1 // pred_region
      _
    $region9: #{lstm_model_forward.1} parent=1 // pred_fallthru
      _
    // Predicated region
    $region10: #{lstm_model_forward.1} parent=1 // pred_check
      _
    $region11: #{lstm_model_forward.1} parent=1 // pred_check_branch
      %23 = sbr.rel (0) target = $region13
    $region12: #{lstm_model_forward.1} parent=1 // pred_region
      _
    $region13: #{lstm_model_forward.1} parent=1 // pred_fallthru
      _
    // Predicated region
    $region14: #{lstm_model_forward.1} parent=1 // pred_check
      _
    $region15: #{lstm_model_forward.1} parent=1 // pred_check_branch
      %25 = sbr.rel (0) target = $region17
    $region16: #{lstm_model_forward.1} parent=1 // pred_region
      _
    $region17: #{lstm_model_forward.1} parent=1 // pred_fallthru
      _
    // Predicated region
    $region18: #{lstm_model_forward.1} parent=1 // pred_check
      _
    $region19: #{lstm_model_forward.1} parent=1 // pred_check_branch
      %27 = sbr.rel (0) target = $region21
    $region20: #{lstm_model_forward.1} parent=1 // pred_region
      %29 = vsyncadd [#allocation5], 0
      %s30 = sshll.u32 %s4, 4
      %s31 = int_to_ptr.hbm [resolvable:$true] %s30
      %s32 = sshll.u32 [#allocation4], 4
      %s33 = int_to_ptr.vmem [resolvable:$true] %s32
      %38 = dma.hbm_to_vmem [thread:$0]  %s31, 1024, %s33, [#allocation5], 64, 64, 4
    $region21: #{lstm_model_forward.1} parent=1 // pred_fallthru
      _
    // Predicated region
    $region22: #{lstm_model_forward.1} parent=1 // pred_check
      _
    $region23: #{lstm_model_forward.1} parent=1 // pred_check_branch
      %40 = sbr.rel (0) target = $region25
    $region24: #{lstm_model_forward.1} parent=1 // pred_region
      %42 = vsyncadd [#allocation7], 0
      %s43 = sshll.u32 %s5, 4
      %s44 = int_to_ptr.hbm [resolvable:$true] %s43
      %s45 = sshll.u32 [#allocation6], 4
      %s46 = int_to_ptr.vmem [resolvable:$true] %s45
      %51 = dma.hbm_to_vmem [thread:$0]  %s44, 1024, %s46, [#allocation7], 64, 64, 4
    $region25: #{lstm_model_forward.1} parent=1 // pred_fallthru
      _
    // Predicated region
    $region26: #{lstm_model_forward.1} parent=1 // pred_check
      _
    $region27: #{lstm_model_forward.1} parent=1 // pred_check_branch
      %53 = sbr.rel (0) target = $region29
    $region28: #{lstm_model_forward.1} parent=1 // pred_region
      _
    $region29: #{lstm_model_forward.1} parent=1 // pred_fallthru
      _
    // Predicated region
    $region30: #{lstm_model_forward.1} parent=1 // pred_check
      _
    $region31: #{lstm_model_forward.1} parent=1 // pred_check_branch
      %55 = sbr.rel (0) target = $region33
    $region32: #{lstm_model_forward.1} parent=1 // pred_region
      _
    $region33: #{lstm_model_forward.1} parent=1 // pred_fallthru
      _
    // Predicated region
    $region34: #{lstm_model_forward.1} parent=1 // pred_check
      _
    $region35: #{lstm_model_forward.1} parent=1 // pred_check_branch
      %57 = sbr.rel (0) target = $region37
    $region36: #{lstm_model_forward.1} parent=1 // pred_region
      _
    $region37: #{lstm_model_forward.1} parent=1 // pred_fallthru
      _
    // Predicated region
    $region38: #{lstm_model_forward.1} parent=1 // pred_check
      _
    $region39: #{lstm_model_forward.1} parent=1 // pred_check_branch
      %59 = sbr.rel (0) target = $region41
    $region40: #{lstm_model_forward.1} parent=1 // pred_region
      %61 = dma.done [#allocation5], 1024
    $region41: #{lstm_model_forward.1} parent=1 // pred_fallthru
      _
    // Predicated region
    $region42: #{lstm_model_forward.1} parent=1 // pred_check
      _
    $region43: #{lstm_model_forward.1} parent=1 // pred_check_branch
      %63 = sbr.rel (0) target = $region45
    $region44: #{lstm_model_forward.1} parent=1 // pred_region
      %65 = dma.done [#allocation7], 1024
    $region45: #{lstm_model_forward.1} parent=1 // pred_fallthru
      _
    %v67 = vlaneseq
    %v68 = vand.u32 %v67, 127
    %vm69 = vcmp.lt.s32.totalorder %v68, 96
    %v70 = vld [vmem:[%s1] sm:$0xf]
    %v71 = vld [vmem:[%s3] sm:$0x1]
    %v72 = vld [vmem:[%s0] sm:$0xf]
    %v73 = vld [vmem:[%s0 + $0x4] sm:$0xf]
    %v74 = vld [vmem:[%s0 + $0x8] sm:$0xf]
    %v75 = vld [vmem:[%s0 + $0xc] sm:$0xf]
    %v76 = vld [vmem:[%s0 + $0x10] sm:$0xf]
    %v77 = vld [vmem:[%s0 + $0x14] sm:$0xf]
    %v78 = vld [vmem:[%s0 + $0x18] sm:$0xf]
    %v79 = vld [vmem:[%s0 + $0x1c] sm:$0xf]
    %v81 = vperm.slane %v71, 0
    %v91 = vunpack.c.l.b16 %v72
    %v92 = vunpack.c.l.b16 %v73
    %v93 = vunpack.c.l.b16 %v74
    %v94 = vunpack.c.l.b16 %v75
    %v95 = vunpack.c.l.b16 %v76
    %v96 = vunpack.c.l.b16 %v77
    %v97 = vunpack.c.l.b16 %v78
    %v98 = vunpack.c.l.b16 %v79
    %v99 = vpack.c.b16 %v92, %v91
    %v100 = vpack.c.b16 %v94, %v93
    %v101 = vpack.c.b16 %v96, %v95
    %v102 = vpack.c.b16 %v98, %v97
    %vm103 = vcmask 64512
    %v105 = vsel %vm103, %v99, 0
    %v108 = vsel %vm103, %v100, 0
    %v111 = vsel %vm103, %v101, 0
    %v114 = vsel %vm103, %v102, 0
    %vm116 = vcmask 1043456
    %v118 = vsel %vm116, %v70, 0
    %120 = vmatpush.bf16.msra.mxu0 0
    %121 = vmatpush.bf16.msra.mxu0 0
    %122 = vmatpush.bf16.msra.mxu0 0
    %123 = vmatpush.bf16.msra.mxu0 0
    %124 = vmatpush.bf16.msra.mxu0 0
    %125 = vmatpush.bf16.msra.mxu0 0
    %126 = vmatpush.bf16.msra.mxu0 0
    %127 = vmatpush.bf16.msra.mxu0 %v118
    %128 = vmatmul.bf16.gmra.mxu0 %v105
    %v129 = vpop.f32.mrf.mxu0
    %v130 = vadd.f32 %v81, %v129
    %v131 = vpop.f32.mrf.mxu0
    %v132 = vadd.f32 %v81, %v131
    %133 = vmatmul.bf16.gmra.mxu0 %v108
    %v134 = vpop.f32.mrf.mxu0
    %v135 = vadd.f32 %v81, %v134
    %v136 = vpop.f32.mrf.mxu0
    %v137 = vadd.f32 %v81, %v136
    %138 = vmatmul.bf16.gmra.mxu0 %v111
    %v139 = vpop.f32.mrf.mxu0
    %v140 = vadd.f32 %v81, %v139
    %v141 = vpop.f32.mrf.mxu0
    %v142 = vadd.f32 %v81, %v141
    %143 = vmatmul.bf16.gmra.mxu0 %v114
    %v144 = vpop.f32.mrf.mxu0
    %v145 = vadd.f32 %v81, %v144
    %v146 = vpop.f32.mrf.mxu0
    %v147 = vadd.f32 %v81, %v146
    %148 = vdwg.mxu0
    %149 = vst [vmem:[#allocation2] sm:$0xff] %v130
    %150 = vst [vmem:[#allocation2 + $0x8] sm:$0xff] %v132
    %151 = vst [vmem:[#allocation2 + $0x10] sm:$0xff] %v135
    %152 = vst [vmem:[#allocation2 + $0x18] sm:$0xff] %v137
    %153 = vst [vmem:[#allocation2 + $0x20] sm:$0xff] %v140
    %154 = vst [vmem:[#allocation2 + $0x28] sm:$0xff] %v142
    %155 = vst [vmem:[#allocation2 + $0x30] sm:$0xff] %v145
    %156 = vst [vmem:[#allocation2 + $0x38] sm:$0xff] %v147
    %v157 = vld [vmem:[%s2] sm:$0xf]
    %v158 = vld [vmem:[%s2 + $0x4] sm:$0xf]
    %v159 = vld [vmem:[%s2 + $0x8] sm:$0xf]
    %v160 = vld [vmem:[%s2 + $0xc] sm:$0xf]
    %v161 = vld [vmem:[%s2 + $0x10] sm:$0xf]
    %v162 = vld [vmem:[%s2 + $0x14] sm:$0xf]
    %v163 = vld [vmem:[%s2 + $0x18] sm:$0xf]
    %v164 = vld [vmem:[%s2 + $0x1c] sm:$0xf]
    %v165 = vld [vmem:[%s2 + $0x20] sm:$0xf]
    %v166 = vld [vmem:[%s2 + $0x24] sm:$0xf]
    %v167 = vld [vmem:[%s2 + $0x28] sm:$0xf]
    %v168 = vld [vmem:[%s2 + $0x2c] sm:$0xf]
    %v169 = vld [vmem:[%s2 + $0x30] sm:$0xf]
    %v170 = vld [vmem:[%s2 + $0x34] sm:$0xf]
    %v171 = vld [vmem:[%s2 + $0x38] sm:$0xf]
    %v172 = vld [vmem:[%s2 + $0x3c] sm:$0xf]
    %v173 = vld [vmem:[#allocation4] sm:$0xf]
    %v174 = vld [vmem:[#allocation4 + $0x4] sm:$0xf]
    %v175 = vld [vmem:[#allocation4 + $0x8] sm:$0xf]
    %v176 = vld [vmem:[#allocation4 + $0xc] sm:$0xf]
    %v177 = vld [vmem:[#allocation4 + $0x10] sm:$0xf]
    %v178 = vld [vmem:[#allocation4 + $0x14] sm:$0xf]
    %v179 = vld [vmem:[#allocation4 + $0x18] sm:$0xf]
    %v180 = vld [vmem:[#allocation4 + $0x1c] sm:$0xf]
    %v181 = vld [vmem:[#allocation4 + $0x20] sm:$0xf]
    %v182 = vld [vmem:[#allocation4 + $0x24] sm:$0xf]
    %v183 = vld [vmem:[#allocation4 + $0x28] sm:$0xf]
    %v184 = vld [vmem:[#allocation4 + $0x2c] sm:$0xf]
    %v185 = vld [vmem:[#allocation4 + $0x30] sm:$0xf]
    %v186 = vld [vmem:[#allocation4 + $0x34] sm:$0xf]
    %v187 = vld [vmem:[#allocation4 + $0x38] sm:$0xf]
    %v188 = vld [vmem:[#allocation4 + $0x3c] sm:$0xf]
    %v189 = vld [vmem:[%s6] sm:$0x1]
    %v190 = vld [vmem:[#allocation2] sm:$0xff]
    %v207 = vunpack.c.l.b16 %v157
    %v208 = vunpack.c.l.b16 %v158
    %v209 = vunpack.c.l.b16 %v159
    %v210 = vunpack.c.l.b16 %v160
    %v211 = vunpack.c.l.b16 %v161
    %v212 = vunpack.c.l.b16 %v162
    %v213 = vunpack.c.l.b16 %v163
    %v214 = vunpack.c.l.b16 %v164
    %v215 = vunpack.c.l.b16 %v165
    %v216 = vunpack.c.l.b16 %v166
    %v217 = vunpack.c.l.b16 %v167
    %v218 = vunpack.c.l.b16 %v168
    %v219 = vunpack.c.l.b16 %v169
    %v220 = vunpack.c.l.b16 %v170
    %v221 = vunpack.c.l.b16 %v171
    %v222 = vunpack.c.l.b16 %v172
    %v223 = vpack.c.b16 %v208, %v207
    %v224 = vpack.c.b16 %v210, %v209
    %v225 = vpack.c.b16 %v212, %v211
    %v226 = vpack.c.b16 %v214, %v213
    %v227 = vpack.c.b16 %v216, %v215
    %v228 = vpack.c.b16 %v218, %v217
    %v229 = vpack.c.b16 %v220, %v219
    %v230 = vpack.c.b16 %v222, %v221
    %239 = vmatpush.bf16.msra.mxu0 %v230
    %240 = vmatpush.bf16.msra.mxu0 %v229
    %241 = vmatpush.bf16.msra.mxu0 %v228
    %242 = vmatpush.bf16.msra.mxu0 %v227
    %243 = vmatpush.bf16.msra.mxu0 %v226
    %244 = vmatpush.bf16.msra.mxu0 %v225
    %245 = vmatpush.bf16.msra.mxu0 %v224
    %246 = vmatpush.bf16.msra.mxu0 %v223
    %247 = vmatmul.bf16.gmra.mxu0 0
    %v248 = vpop.f32.mrf.mxu0
    %v249 = vadd.f32 0.0, %v248
    %v250 = vpop.f32.mrf.mxu0
    %251 = vdwg.mxu0
    %v252 = vadd.f32 %v190, %v249
    %v253 = vmul.f32 %v252, 0.5
    %v254 = vtanh.pop %v253
    %v255 = vadd.f32 %v254, 1.0
    %v256 = vmul.f32 %v255, 0.5
    %v257 = vtanh.pop %v252
    %v258 = vsel %vm69, %v256, %v257
    %259 = vrot.lane.b32.xlu0 %v258, 96
    %v260 = vpop.permute.xlu0 %259
    %261 = vrot.lane.b32.xlu0 %v258, 64
    %v262 = vpop.permute.xlu0 %261
    %263 = vrot.lane.b32.xlu0 %v258, 32
    %v264 = vpop.permute.xlu0 %263
    %v265 = vmul.f32 %v260, 0.0
    %v266 = vmul.f32 %v258, %v264
    %v267 = vadd.f32 %v265, %v266
    %v268 = vtanh.pop %v267
    %v269 = vmul.f32 %v262, %v268
    %v270 = vpack.c.bf16 %v269, %v269
    %v272 = vperm.slane %v189, 0
    %v290 = vunpack.c.l.b16 %v173
    %v291 = vunpack.c.l.b16 %v174
    %v292 = vunpack.c.l.b16 %v175
    %v293 = vunpack.c.l.b16 %v176
    %v294 = vunpack.c.l.b16 %v177
    %v295 = vunpack.c.l.b16 %v178
    %v296 = vunpack.c.l.b16 %v179
    %v297 = vunpack.c.l.b16 %v180
    %v298 = vunpack.c.l.b16 %v181
    %v299 = vunpack.c.l.b16 %v182
    %v300 = vunpack.c.l.b16 %v183
    %v301 = vunpack.c.l.b16 %v184
    %v302 = vunpack.c.l.b16 %v185
    %v303 = vunpack.c.l.b16 %v186
    %v304 = vunpack.c.l.b16 %v187
    %v305 = vunpack.c.l.b16 %v188
    %v306 = vpack.c.b16 %v291, %v290
    %v307 = vpack.c.b16 %v293, %v292
    %v308 = vpack.c.b16 %v295, %v294
    %v309 = vpack.c.b16 %v297, %v296
    %v310 = vpack.c.b16 %v299, %v298
    %v311 = vpack.c.b16 %v301, %v300
    %v312 = vpack.c.b16 %v303, %v302
    %v313 = vpack.c.b16 %v305, %v304
    %322 = vmatpush.bf16.msra.mxu0 %v313
    %323 = vmatpush.bf16.msra.mxu0 %v312
    %324 = vmatpush.bf16.msra.mxu0 %v311
    %325 = vmatpush.bf16.msra.mxu0 %v310
    %326 = vmatpush.bf16.msra.mxu0 %v309
    %327 = vmatpush.bf16.msra.mxu0 %v308
    %328 = vmatpush.bf16.msra.mxu0 %v307
    %329 = vmatpush.bf16.msra.mxu0 %v306
    %330 = vmatmul.bf16.gmra.mxu0 %v270
    %v331 = vpop.f32.mrf.mxu0
    %v332 = vadd.f32 %v272, %v331
    %v333 = vpop.f32.mrf.mxu0
    %334 = vdwg.mxu0
    %335 = vst [vmem:[#allocation2] sm:$0xff] %v332
    %v336 = vld [vmem:[#allocation2 + $0x8] sm:$0xff]
    %337 = vmatpush.bf16.msra.mxu0 %v230
    %338 = vmatpush.bf16.msra.mxu0 %v229
    %339 = vmatpush.bf16.msra.mxu0 %v228
    %340 = vmatpush.bf16.msra.mxu0 %v227
    %341 = vmatpush.bf16.msra.mxu0 %v226
    %342 = vmatpush.bf16.msra.mxu0 %v225
    %343 = vmatpush.bf16.msra.mxu0 %v224
    %344 = vmatpush.bf16.msra.mxu0 %v223
    %345 = vmatmul.bf16.gmra.mxu0 %v270
    %v346 = vpop.f32.mrf.mxu0
    %v347 = vadd.f32 0.0, %v346
    %v348 = vpop.f32.mrf.mxu0
    %349 = vdwg.mxu0
    %v350 = vadd.f32 %v336, %v347
    %v351 = vmul.f32 %v350, 0.5
    %v352 = vtanh.pop %v351
    %v353 = vadd.f32 %v352, 1.0
    %v354 = vmul.f32 %v353, 0.5
    %v355 = vtanh.pop %v350
    %v356 = vsel %vm69, %v354, %v355
    %357 = vrot.lane.b32.xlu0 %v356, 96
    %v358 = vpop.permute.xlu0 %357
    %359 = vrot.lane.b32.xlu0 %v356, 64
    %v360 = vpop.permute.xlu0 %359
    %361 = vrot.lane.b32.xlu0 %v356, 32
    %v362 = vpop.permute.xlu0 %361
    %v363 = vmul.f32 %v358, %v267
    %v364 = vmul.f32 %v356, %v362
    %v365 = vadd.f32 %v363, %v364
    %v366 = vtanh.pop %v365
    %v367 = vmul.f32 %v360, %v366
    %v368 = vpack.c.bf16 %v367, %v367
    %369 = vmatpush.bf16.msra.mxu0 %v313
    %370 = vmatpush.bf16.msra.mxu0 %v312
    %371 = vmatpush.bf16.msra.mxu0 %v311
    %372 = vmatpush.bf16.msra.mxu0 %v310
    %373 = vmatpush.bf16.msra.mxu0 %v309
    %374 = vmatpush.bf16.msra.mxu0 %v308
    %375 = vmatpush.bf16.msra.mxu0 %v307
    %376 = vmatpush.bf16.msra.mxu0 %v306
    %377 = vmatmul.bf16.gmra.mxu0 %v368
    %v378 = vpop.f32.mrf.mxu0
    %v379 = vadd.f32 %v272, %v378
    %v380 = vpop.f32.mrf.mxu0
    %381 = vdwg.mxu0
    %382 = vst [vmem:[#allocation2 + $0x8] sm:$0xff] %v379
    %v383 = vld [vmem:[#allocation2 + $0x10] sm:$0xff]
    %384 = vmatpush.bf16.msra.mxu0 %v230
    %385 = vmatpush.bf16.msra.mxu0 %v229
    %386 = vmatpush.bf16.msra.mxu0 %v228
    %387 = vmatpush.bf16.msra.mxu0 %v227
    %388 = vmatpush.bf16.msra.mxu0 %v226
    %389 = vmatpush.bf16.msra.mxu0 %v225
    %390 = vmatpush.bf16.msra.mxu0 %v224
    %391 = vmatpush.bf16.msra.mxu0 %v223
    %392 = vmatmul.bf16.gmra.mxu0 %v368
    %v393 = vpop.f32.mrf.mxu0
    %v394 = vadd.f32 0.0, %v393
    %v395 = vpop.f32.mrf.mxu0
    %396 = vdwg.mxu0
    %v397 = vadd.f32 %v383, %v394
    %v398 = vmul.f32 %v397, 0.5
    %v399 = vtanh.pop %v398
    %v400 = vadd.f32 %v399, 1.0
    %v401 = vmul.f32 %v400, 0.5
    %v402 = vtanh.pop %v397
    %v403 = vsel %vm69, %v401, %v402
    %404 = vrot.lane.b32.xlu0 %v403, 96
    %v405 = vpop.permute.xlu0 %404
    %406 = vrot.lane.b32.xlu0 %v403, 64
    %v407 = vpop.permute.xlu0 %406
    %408 = vrot.lane.b32.xlu0 %v403, 32
    %v409 = vpop.permute.xlu0 %408
    %v410 = vmul.f32 %v405, %v365
    %v411 = vmul.f32 %v403, %v409
    %v412 = vadd.f32 %v410, %v411
    %v413 = vtanh.pop %v412
    %v414 = vmul.f32 %v407, %v413
    %v415 = vpack.c.bf16 %v414, %v414
    %416 = vmatpush.bf16.msra.mxu0 %v313
    %417 = vmatpush.bf16.msra.mxu0 %v312
    %418 = vmatpush.bf16.msra.mxu0 %v311
    %419 = vmatpush.bf16.msra.mxu0 %v310
    %420 = vmatpush.bf16.msra.mxu0 %v309
    %421 = vmatpush.bf16.msra.mxu0 %v308
    %422 = vmatpush.bf16.msra.mxu0 %v307
    %423 = vmatpush.bf16.msra.mxu0 %v306
    %424 = vmatmul.bf16.gmra.mxu0 %v415
    %v425 = vpop.f32.mrf.mxu0
    %v426 = vadd.f32 %v272, %v425
    %v427 = vpop.f32.mrf.mxu0
    %428 = vdwg.mxu0
    %429 = vst [vmem:[#allocation2 + $0x10] sm:$0xff] %v426
    %v430 = vld [vmem:[#allocation2 + $0x18] sm:$0xff]
    %431 = vmatpush.bf16.msra.mxu0 %v230
    %432 = vmatpush.bf16.msra.mxu0 %v229
    %433 = vmatpush.bf16.msra.mxu0 %v228
    %434 = vmatpush.bf16.msra.mxu0 %v227
    %435 = vmatpush.bf16.msra.mxu0 %v226
    %436 = vmatpush.bf16.msra.mxu0 %v225
    %437 = vmatpush.bf16.msra.mxu0 %v224
    %438 = vmatpush.bf16.msra.mxu0 %v223
    %439 = vmatmul.bf16.gmra.mxu0 %v415
    %v440 = vpop.f32.mrf.mxu0
    %v441 = vadd.f32 0.0, %v440
    %v442 = vpop.f32.mrf.mxu0
    %443 = vdwg.mxu0
    %v444 = vadd.f32 %v430, %v441
    %v445 = vmul.f32 %v444, 0.5
    %v446 = vtanh.pop %v445
    %v447 = vadd.f32 %v446, 1.0
    %v448 = vmul.f32 %v447, 0.5
    %v449 = vtanh.pop %v444
    %v450 = vsel %vm69, %v448, %v449
    %451 = vrot.lane.b32.xlu0 %v450, 96
    %v452 = vpop.permute.xlu0 %451
    %453 = vrot.lane.b32.xlu0 %v450, 64
    %v454 = vpop.permute.xlu0 %453
    %455 = vrot.lane.b32.xlu0 %v450, 32
    %v456 = vpop.permute.xlu0 %455
    %v457 = vmul.f32 %v452, %v412
    %v458 = vmul.f32 %v450, %v456
    %v459 = vadd.f32 %v457, %v458
    %v460 = vtanh.pop %v459
    %v461 = vmul.f32 %v454, %v460
    %v462 = vpack.c.bf16 %v461, %v461
    %463 = vmatpush.bf16.msra.mxu0 %v313
    %464 = vmatpush.bf16.msra.mxu0 %v312
    %465 = vmatpush.bf16.msra.mxu0 %v311
    %466 = vmatpush.bf16.msra.mxu0 %v310
    %467 = vmatpush.bf16.msra.mxu0 %v309
    %468 = vmatpush.bf16.msra.mxu0 %v308
    %469 = vmatpush.bf16.msra.mxu0 %v307
    %470 = vmatpush.bf16.msra.mxu0 %v306
    %471 = vmatmul.bf16.gmra.mxu0 %v462
    %v472 = vpop.f32.mrf.mxu0
    %v473 = vadd.f32 %v272, %v472
    %v474 = vpop.f32.mrf.mxu0
    %475 = vdwg.mxu0
    %476 = vst [vmem:[#allocation2 + $0x18] sm:$0xff] %v473
    %v477 = vld [vmem:[#allocation2 + $0x20] sm:$0xff]
    %478 = vmatpush.bf16.msra.mxu0 %v230
    %479 = vmatpush.bf16.msra.mxu0 %v229
    %480 = vmatpush.bf16.msra.mxu0 %v228
    %481 = vmatpush.bf16.msra.mxu0 %v227
    %482 = vmatpush.bf16.msra.mxu0 %v226
    %483 = vmatpush.bf16.msra.mxu0 %v225
    %484 = vmatpush.bf16.msra.mxu0 %v224
    %485 = vmatpush.bf16.msra.mxu0 %v223
    %486 = vmatmul.bf16.gmra.mxu0 %v462
    %v487 = vpop.f32.mrf.mxu0
    %v488 = vadd.f32 0.0, %v487
    %v489 = vpop.f32.mrf.mxu0
    %490 = vdwg.mxu0
    %v491 = vadd.f32 %v477, %v488
    %v492 = vmul.f32 %v491, 0.5
    %v493 = vtanh.pop %v492
    %v494 = vadd.f32 %v493, 1.0
    %v495 = vmul.f32 %v494, 0.5
    %v496 = vtanh.pop %v491
    %v497 = vsel %vm69, %v495, %v496
    %498 = vrot.lane.b32.xlu0 %v497, 96
    %v499 = vpop.permute.xlu0 %498
    %500 = vrot.lane.b32.xlu0 %v497, 64
    %v501 = vpop.permute.xlu0 %500
    %502 = vrot.lane.b32.xlu0 %v497, 32
    %v503 = vpop.permute.xlu0 %502
    %v504 = vmul.f32 %v499, %v459
    %v505 = vmul.f32 %v497, %v503
    %v506 = vadd.f32 %v504, %v505
    %v507 = vtanh.pop %v506
    %v508 = vmul.f32 %v501, %v507
    %v509 = vpack.c.bf16 %v508, %v508
    %510 = vmatpush.bf16.msra.mxu0 %v313
    %511 = vmatpush.bf16.msra.mxu0 %v312
    %512 = vmatpush.bf16.msra.mxu0 %v311
    %513 = vmatpush.bf16.msra.mxu0 %v310
    %514 = vmatpush.bf16.msra.mxu0 %v309
    %515 = vmatpush.bf16.msra.mxu0 %v308
    %516 = vmatpush.bf16.msra.mxu0 %v307
    %517 = vmatpush.bf16.msra.mxu0 %v306
    %518 = vmatmul.bf16.gmra.mxu0 %v509
    %v519 = vpop.f32.mrf.mxu0
    %v520 = vadd.f32 %v272, %v519
    %v521 = vpop.f32.mrf.mxu0
    %522 = vdwg.mxu0
    %523 = vst [vmem:[#allocation2 + $0x20] sm:$0xff] %v520
    %v524 = vld [vmem:[#allocation2 + $0x28] sm:$0xff]
    %525 = vmatpush.bf16.msra.mxu0 %v230
    %526 = vmatpush.bf16.msra.mxu0 %v229
    %527 = vmatpush.bf16.msra.mxu0 %v228
    %528 = vmatpush.bf16.msra.mxu0 %v227
    %529 = vmatpush.bf16.msra.mxu0 %v226
    %530 = vmatpush.bf16.msra.mxu0 %v225
    %531 = vmatpush.bf16.msra.mxu0 %v224
    %532 = vmatpush.bf16.msra.mxu0 %v223
    %533 = vmatmul.bf16.gmra.mxu0 %v509
    %v534 = vpop.f32.mrf.mxu0
    %v535 = vadd.f32 0.0, %v534
    %v536 = vpop.f32.mrf.mxu0
    %537 = vdwg.mxu0
    %v538 = vadd.f32 %v524, %v535
    %v539 = vmul.f32 %v538, 0.5
    %v540 = vtanh.pop %v539
    %v541 = vadd.f32 %v540, 1.0
    %v542 = vmul.f32 %v541, 0.5
    %v543 = vtanh.pop %v538
    %v544 = vsel %vm69, %v542, %v543
    %545 = vrot.lane.b32.xlu0 %v544, 96
    %v546 = vpop.permute.xlu0 %545
    %547 = vrot.lane.b32.xlu0 %v544, 64
    %v548 = vpop.permute.xlu0 %547
    %549 = vrot.lane.b32.xlu0 %v544, 32
    %v550 = vpop.permute.xlu0 %549
    %v551 = vmul.f32 %v546, %v506
    %v552 = vmul.f32 %v544, %v550
    %v553 = vadd.f32 %v551, %v552
    %v554 = vtanh.pop %v553
    %v555 = vmul.f32 %v548, %v554
    %v556 = vpack.c.bf16 %v555, %v555
    %557 = vmatpush.bf16.msra.mxu0 %v313
    %558 = vmatpush.bf16.msra.mxu0 %v312
    %559 = vmatpush.bf16.msra.mxu0 %v311
    %560 = vmatpush.bf16.msra.mxu0 %v310
    %561 = vmatpush.bf16.msra.mxu0 %v309
    %562 = vmatpush.bf16.msra.mxu0 %v308
    %563 = vmatpush.bf16.msra.mxu0 %v307
    %564 = vmatpush.bf16.msra.mxu0 %v306
    %565 = vmatmul.bf16.gmra.mxu0 %v556
    %v566 = vpop.f32.mrf.mxu0
    %v567 = vadd.f32 %v272, %v566
    %v568 = vpop.f32.mrf.mxu0
    %569 = vdwg.mxu0
    %570 = vst [vmem:[#allocation2 + $0x28] sm:$0xff] %v567
    %v571 = vld [vmem:[#allocation2 + $0x30] sm:$0xff]
    %572 = vmatpush.bf16.msra.mxu0 %v230
    %573 = vmatpush.bf16.msra.mxu0 %v229
    %574 = vmatpush.bf16.msra.mxu0 %v228
    %575 = vmatpush.bf16.msra.mxu0 %v227
    %576 = vmatpush.bf16.msra.mxu0 %v226
    %577 = vmatpush.bf16.msra.mxu0 %v225
    %578 = vmatpush.bf16.msra.mxu0 %v224
    %579 = vmatpush.bf16.msra.mxu0 %v223
    %580 = vmatmul.bf16.gmra.mxu0 %v556
    %v581 = vpop.f32.mrf.mxu0
    %v582 = vadd.f32 0.0, %v581
    %v583 = vpop.f32.mrf.mxu0
    %584 = vdwg.mxu0
    %v585 = vadd.f32 %v571, %v582
    %v586 = vmul.f32 %v585, 0.5
    %v587 = vtanh.pop %v586
    %v588 = vadd.f32 %v587, 1.0
    %v589 = vmul.f32 %v588, 0.5
    %v590 = vtanh.pop %v585
    %v591 = vsel %vm69, %v589, %v590
    %592 = vrot.lane.b32.xlu0 %v591, 96
    %v593 = vpop.permute.xlu0 %592
    %594 = vrot.lane.b32.xlu0 %v591, 64
    %v595 = vpop.permute.xlu0 %594
    %596 = vrot.lane.b32.xlu0 %v591, 32
    %v597 = vpop.permute.xlu0 %596
    %v598 = vmul.f32 %v593, %v553
    %v599 = vmul.f32 %v591, %v597
    %v600 = vadd.f32 %v598, %v599
    %v601 = vtanh.pop %v600
    %v602 = vmul.f32 %v595, %v601
    %v603 = vpack.c.bf16 %v602, %v602
    %604 = vmatpush.bf16.msra.mxu0 %v313
    %605 = vmatpush.bf16.msra.mxu0 %v312
    %606 = vmatpush.bf16.msra.mxu0 %v311
    %607 = vmatpush.bf16.msra.mxu0 %v310
    %608 = vmatpush.bf16.msra.mxu0 %v309
    %609 = vmatpush.bf16.msra.mxu0 %v308
    %610 = vmatpush.bf16.msra.mxu0 %v307
    %611 = vmatpush.bf16.msra.mxu0 %v306
    %612 = vmatmul.bf16.gmra.mxu0 %v603
    %v613 = vpop.f32.mrf.mxu0
    %v614 = vadd.f32 %v272, %v613
    %v615 = vpop.f32.mrf.mxu0
    %616 = vdwg.mxu0
    %617 = vst [vmem:[#allocation2 + $0x30] sm:$0xff] %v614
    %v618 = vld [vmem:[#allocation2 + $0x38] sm:$0xff]
    %619 = vmatpush.bf16.msra.mxu0 %v230
    %620 = vmatpush.bf16.msra.mxu0 %v229
    %621 = vmatpush.bf16.msra.mxu0 %v228
    %622 = vmatpush.bf16.msra.mxu0 %v227
    %623 = vmatpush.bf16.msra.mxu0 %v226
    %624 = vmatpush.bf16.msra.mxu0 %v225
    %625 = vmatpush.bf16.msra.mxu0 %v224
    %626 = vmatpush.bf16.msra.mxu0 %v223
    %627 = vmatmul.bf16.gmra.mxu0 %v603
    %v628 = vpop.f32.mrf.mxu0
    %v629 = vadd.f32 0.0, %v628
    %v630 = vpop.f32.mrf.mxu0
    %631 = vdwg.mxu0
    %v632 = vadd.f32 %v618, %v629
    %v633 = vmul.f32 %v632, 0.5
    %v634 = vtanh.pop %v633
    %v635 = vadd.f32 %v634, 1.0
    %v636 = vmul.f32 %v635, 0.5
    %v637 = vtanh.pop %v632
    %v638 = vsel %vm69, %v636, %v637
    %639 = vrot.lane.b32.xlu0 %v638, 96
    %v640 = vpop.permute.xlu0 %639
    %641 = vrot.lane.b32.xlu0 %v638, 64
    %v642 = vpop.permute.xlu0 %641
    %643 = vrot.lane.b32.xlu0 %v638, 32
    %v644 = vpop.permute.xlu0 %643
    %v645 = vmul.f32 %v640, %v600
    %v646 = vmul.f32 %v638, %v644
    %v647 = vadd.f32 %v645, %v646
    %v648 = vtanh.pop %v647
    %v649 = vmul.f32 %v642, %v648
    %v650 = vpack.c.bf16 %v649, %v649
    %651 = vmatpush.bf16.msra.mxu0 %v313
    %652 = vmatpush.bf16.msra.mxu0 %v312
    %653 = vmatpush.bf16.msra.mxu0 %v311
    %654 = vmatpush.bf16.msra.mxu0 %v310
    %655 = vmatpush.bf16.msra.mxu0 %v309
    %656 = vmatpush.bf16.msra.mxu0 %v308
    %657 = vmatpush.bf16.msra.mxu0 %v307
    %658 = vmatpush.bf16.msra.mxu0 %v306
    %659 = vmatmul.bf16.gmra.mxu0 %v650
    %v660 = vpop.f32.mrf.mxu0
    %v661 = vadd.f32 %v272, %v660
    %v662 = vpop.f32.mrf.mxu0
    %663 = vdwg.mxu0
    %664 = vst [vmem:[#allocation2 + $0x38] sm:$0xff] %v661
    %v665 = vld [vmem:[#allocation6] sm:$0xf]
    %v666 = vld [vmem:[#allocation6 + $0x4] sm:$0xf]
    %v667 = vld [vmem:[#allocation6 + $0x8] sm:$0xf]
    %v668 = vld [vmem:[#allocation6 + $0xc] sm:$0xf]
    %v669 = vld [vmem:[#allocation6 + $0x10] sm:$0xf]
    %v670 = vld [vmem:[#allocation6 + $0x14] sm:$0xf]
    %v671 = vld [vmem:[#allocation6 + $0x18] sm:$0xf]
    %v672 = vld [vmem:[#allocation6 + $0x1c] sm:$0xf]
    %v673 = vld [vmem:[#allocation6 + $0x20] sm:$0xf]
    %v674 = vld [vmem:[#allocation6 + $0x24] sm:$0xf]
    %v675 = vld [vmem:[#allocation6 + $0x28] sm:$0xf]
    %v676 = vld [vmem:[#allocation6 + $0x2c] sm:$0xf]
    %v677 = vld [vmem:[#allocation6 + $0x30] sm:$0xf]
    %v678 = vld [vmem:[#allocation6 + $0x34] sm:$0xf]
    %v679 = vld [vmem:[#allocation6 + $0x38] sm:$0xf]
    %v680 = vld [vmem:[#allocation6 + $0x3c] sm:$0xf]
    %v681 = vld [vmem:[#allocation2] sm:$0xff]
    %v698 = vunpack.c.l.b16 %v665
    %v699 = vunpack.c.l.b16 %v666
    %v700 = vunpack.c.l.b16 %v667
    %v701 = vunpack.c.l.b16 %v668
    %v702 = vunpack.c.l.b16 %v669
    %v703 = vunpack.c.l.b16 %v670
    %v704 = vunpack.c.l.b16 %v671
    %v705 = vunpack.c.l.b16 %v672
    %v706 = vunpack.c.l.b16 %v673
    %v707 = vunpack.c.l.b16 %v674
    %v708 = vunpack.c.l.b16 %v675
    %v709 = vunpack.c.l.b16 %v676
    %v710 = vunpack.c.l.b16 %v677
    %v711 = vunpack.c.l.b16 %v678
    %v712 = vunpack.c.l.b16 %v679
    %v713 = vunpack.c.l.b16 %v680
    %v714 = vpack.c.b16 %v699, %v698
    %v715 = vpack.c.b16 %v701, %v700
    %v716 = vpack.c.b16 %v703, %v702
    %v717 = vpack.c.b16 %v705, %v704
    %v718 = vpack.c.b16 %v707, %v706
    %v719 = vpack.c.b16 %v709, %v708
    %v720 = vpack.c.b16 %v711, %v710
    %v721 = vpack.c.b16 %v713, %v712
    %730 = vmatpush.bf16.msra.mxu0 %v721
    %731 = vmatpush.bf16.msra.mxu0 %v720
    %732 = vmatpush.bf16.msra.mxu0 %v719
    %733 = vmatpush.bf16.msra.mxu0 %v718
    %734 = vmatpush.bf16.msra.mxu0 %v717
    %735 = vmatpush.bf16.msra.mxu0 %v716
    %736 = vmatpush.bf16.msra.mxu0 %v715
    %737 = vmatpush.bf16.msra.mxu0 %v714
    %738 = vmatmul.bf16.gmra.mxu0 0
    %v739 = vpop.f32.mrf.mxu0
    %v740 = vadd.f32 0.0, %v739
    %v741 = vpop.f32.mrf.mxu0
    %742 = vdwg.mxu0
    %v743 = vadd.f32 %v681, %v740
    %v744 = vmul.f32 %v743, 0.5
    %v745 = vtanh.pop %v744
    %v746 = vadd.f32 %v745, 1.0
    %v747 = vmul.f32 %v746, 0.5
    %v748 = vtanh.pop %v743
    %v749 = vsel %vm69, %v747, %v748
    %750 = vrot.lane.b32.xlu0 %v749, 96
    %v751 = vpop.permute.xlu0 %750
    %752 = vrot.lane.b32.xlu0 %v749, 64
    %v753 = vpop.permute.xlu0 %752
    %754 = vrot.lane.b32.xlu0 %v749, 32
    %v755 = vpop.permute.xlu0 %754
    %v756 = vmul.f32 %v751, 0.0
    %v757 = vmul.f32 %v749, %v755
    %v758 = vadd.f32 %v756, %v757
    %v759 = vtanh.pop %v758
    %v760 = vmul.f32 %v753, %v759
    %v761 = vld [vmem:[#allocation2 + $0x8] sm:$0xff]
    %v762 = vpack.c.bf16 %v760, %v760
    %763 = vmatpush.bf16.msra.mxu0 %v721
    %764 = vmatpush.bf16.msra.mxu0 %v720
    %765 = vmatpush.bf16.msra.mxu0 %v719
    %766 = vmatpush.bf16.msra.mxu0 %v718
    %767 = vmatpush.bf16.msra.mxu0 %v717
    %768 = vmatpush.bf16.msra.mxu0 %v716
    %769 = vmatpush.bf16.msra.mxu0 %v715
    %770 = vmatpush.bf16.msra.mxu0 %v714
    %771 = vmatmul.bf16.gmra.mxu0 %v762
    %v772 = vpop.f32.mrf.mxu0
    %v773 = vadd.f32 0.0, %v772
    %v774 = vpop.f32.mrf.mxu0
    %775 = vdwg.mxu0
    %v776 = vadd.f32 %v761, %v773
    %v777 = vmul.f32 %v776, 0.5
    %v778 = vtanh.pop %v777
    %v779 = vadd.f32 %v778, 1.0
    %v780 = vmul.f32 %v779, 0.5
    %v781 = vtanh.pop %v776
    %v782 = vsel %vm69, %v780, %v781
    %783 = vrot.lane.b32.xlu0 %v782, 96
    %v784 = vpop.permute.xlu0 %783
    %785 = vrot.lane.b32.xlu0 %v782, 64
    %v786 = vpop.permute.xlu0 %785
    %787 = vrot.lane.b32.xlu0 %v782, 32
    %v788 = vpop.permute.xlu0 %787
    %v789 = vmul.f32 %v784, %v758
    %v790 = vmul.f32 %v782, %v788
    %v791 = vadd.f32 %v789, %v790
    %v792 = vtanh.pop %v791
    %v793 = vmul.f32 %v786, %v792
    %v794 = vld [vmem:[#allocation2 + $0x10] sm:$0xff]
    %v795 = vpack.c.bf16 %v793, %v793
    %796 = vmatpush.bf16.msra.mxu0 %v721
    %797 = vmatpush.bf16.msra.mxu0 %v720
    %798 = vmatpush.bf16.msra.mxu0 %v719
    %799 = vmatpush.bf16.msra.mxu0 %v718
    %800 = vmatpush.bf16.msra.mxu0 %v717
    %801 = vmatpush.bf16.msra.mxu0 %v716
    %802 = vmatpush.bf16.msra.mxu0 %v715
    %803 = vmatpush.bf16.msra.mxu0 %v714
    %804 = vmatmul.bf16.gmra.mxu0 %v795
    %v805 = vpop.f32.mrf.mxu0
    %v806 = vadd.f32 0.0, %v805
    %v807 = vpop.f32.mrf.mxu0
    %808 = vdwg.mxu0
    %v809 = vadd.f32 %v794, %v806
    %v810 = vmul.f32 %v809, 0.5
    %v811 = vtanh.pop %v810
    %v812 = vadd.f32 %v811, 1.0
    %v813 = vmul.f32 %v812, 0.5
    %v814 = vtanh.pop %v809
    %v815 = vsel %vm69, %v813, %v814
    %816 = vrot.lane.b32.xlu0 %v815, 96
    %v817 = vpop.permute.xlu0 %816
    %818 = vrot.lane.b32.xlu0 %v815, 64
    %v819 = vpop.permute.xlu0 %818
    %820 = vrot.lane.b32.xlu0 %v815, 32
    %v821 = vpop.permute.xlu0 %820
    %v822 = vmul.f32 %v817, %v791
    %v823 = vmul.f32 %v815, %v821
    %v824 = vadd.f32 %v822, %v823
    %v825 = vtanh.pop %v824
    %v826 = vmul.f32 %v819, %v825
    %v827 = vld [vmem:[#allocation2 + $0x18] sm:$0xff]
    %v828 = vpack.c.bf16 %v826, %v826
    %829 = vmatpush.bf16.msra.mxu0 %v721
    %830 = vmatpush.bf16.msra.mxu0 %v720
    %831 = vmatpush.bf16.msra.mxu0 %v719
    %832 = vmatpush.bf16.msra.mxu0 %v718
    %833 = vmatpush.bf16.msra.mxu0 %v717
    %834 = vmatpush.bf16.msra.mxu0 %v716
    %835 = vmatpush.bf16.msra.mxu0 %v715
    %836 = vmatpush.bf16.msra.mxu0 %v714
    %837 = vmatmul.bf16.gmra.mxu0 %v828
    %v838 = vpop.f32.mrf.mxu0
    %v839 = vadd.f32 0.0, %v838
    %v840 = vpop.f32.mrf.mxu0
    %841 = vdwg.mxu0
    %v842 = vadd.f32 %v827, %v839
    %v843 = vmul.f32 %v842, 0.5
    %v844 = vtanh.pop %v843
    %v845 = vadd.f32 %v844, 1.0
    %v846 = vmul.f32 %v845, 0.5
    %v847 = vtanh.pop %v842
    %v848 = vsel %vm69, %v846, %v847
    %849 = vrot.lane.b32.xlu0 %v848, 96
    %v850 = vpop.permute.xlu0 %849
    %851 = vrot.lane.b32.xlu0 %v848, 64
    %v852 = vpop.permute.xlu0 %851
    %853 = vrot.lane.b32.xlu0 %v848, 32
    %v854 = vpop.permute.xlu0 %853
    %v855 = vmul.f32 %v850, %v824
    %v856 = vmul.f32 %v848, %v854
    %v857 = vadd.f32 %v855, %v856
    %v858 = vtanh.pop %v857
    %v859 = vmul.f32 %v852, %v858
    %v860 = vld [vmem:[#allocation2 + $0x20] sm:$0xff]
    %v861 = vpack.c.bf16 %v859, %v859
    %862 = vmatpush.bf16.msra.mxu0 %v721
    %863 = vmatpush.bf16.msra.mxu0 %v720
    %864 = vmatpush.bf16.msra.mxu0 %v719
    %865 = vmatpush.bf16.msra.mxu0 %v718
    %866 = vmatpush.bf16.msra.mxu0 %v717
    %867 = vmatpush.bf16.msra.mxu0 %v716
    %868 = vmatpush.bf16.msra.mxu0 %v715
    %869 = vmatpush.bf16.msra.mxu0 %v714
    %870 = vmatmul.bf16.gmra.mxu0 %v861
    %v871 = vpop.f32.mrf.mxu0
    %v872 = vadd.f32 0.0, %v871
    %v873 = vpop.f32.mrf.mxu0
    %874 = vdwg.mxu0
    %v875 = vadd.f32 %v860, %v872
    %v876 = vmul.f32 %v875, 0.5
    %v877 = vtanh.pop %v876
    %v878 = vadd.f32 %v877, 1.0
    %v879 = vmul.f32 %v878, 0.5
    %v880 = vtanh.pop %v875
    %v881 = vsel %vm69, %v879, %v880
    %882 = vrot.lane.b32.xlu0 %v881, 96
    %v883 = vpop.permute.xlu0 %882
    %884 = vrot.lane.b32.xlu0 %v881, 64
    %v885 = vpop.permute.xlu0 %884
    %886 = vrot.lane.b32.xlu0 %v881, 32
    %v887 = vpop.permute.xlu0 %886
    %v888 = vmul.f32 %v883, %v857
    %v889 = vmul.f32 %v881, %v887
    %v890 = vadd.f32 %v888, %v889
    %v891 = vtanh.pop %v890
    %v892 = vmul.f32 %v885, %v891
    %v893 = vld [vmem:[#allocation2 + $0x28] sm:$0xff]
    %v894 = vpack.c.bf16 %v892, %v892
    %895 = vmatpush.bf16.msra.mxu0 %v721
    %896 = vmatpush.bf16.msra.mxu0 %v720
    %897 = vmatpush.bf16.msra.mxu0 %v719
    %898 = vmatpush.bf16.msra.mxu0 %v718
    %899 = vmatpush.bf16.msra.mxu0 %v717
    %900 = vmatpush.bf16.msra.mxu0 %v716
    %901 = vmatpush.bf16.msra.mxu0 %v715
    %902 = vmatpush.bf16.msra.mxu0 %v714
    %903 = vmatmul.bf16.gmra.mxu0 %v894
    %v904 = vpop.f32.mrf.mxu0
    %v905 = vadd.f32 0.0, %v904
    %v906 = vpop.f32.mrf.mxu0
    %907 = vdwg.mxu0
    %v908 = vadd.f32 %v893, %v905
    %v909 = vmul.f32 %v908, 0.5
    %v910 = vtanh.pop %v909
    %v911 = vadd.f32 %v910, 1.0
    %v912 = vmul.f32 %v911, 0.5
    %v913 = vtanh.pop %v908
    %v914 = vsel %vm69, %v912, %v913
    %915 = vrot.lane.b32.xlu0 %v914, 96
    %v916 = vpop.permute.xlu0 %915
    %917 = vrot.lane.b32.xlu0 %v914, 64
    %v918 = vpop.permute.xlu0 %917
    %919 = vrot.lane.b32.xlu0 %v914, 32
    %v920 = vpop.permute.xlu0 %919
    %v921 = vmul.f32 %v916, %v890
    %v922 = vmul.f32 %v914, %v920
    %v923 = vadd.f32 %v921, %v922
    %v924 = vtanh.pop %v923
    %v925 = vmul.f32 %v918, %v924
    %v926 = vld [vmem:[#allocation2 + $0x30] sm:$0xff]
    %v927 = vpack.c.bf16 %v925, %v925
    %928 = vmatpush.bf16.msra.mxu0 %v721
    %929 = vmatpush.bf16.msra.mxu0 %v720
    %930 = vmatpush.bf16.msra.mxu0 %v719
    %931 = vmatpush.bf16.msra.mxu0 %v718
    %932 = vmatpush.bf16.msra.mxu0 %v717
    %933 = vmatpush.bf16.msra.mxu0 %v716
    %934 = vmatpush.bf16.msra.mxu0 %v715
    %935 = vmatpush.bf16.msra.mxu0 %v714
    %936 = vmatmul.bf16.gmra.mxu0 %v927
    %v937 = vpop.f32.mrf.mxu0
    %v938 = vadd.f32 0.0, %v937
    %v939 = vpop.f32.mrf.mxu0
    %940 = vdwg.mxu0
    %v941 = vadd.f32 %v926, %v938
    %v942 = vmul.f32 %v941, 0.5
    %v943 = vtanh.pop %v942
    %v944 = vadd.f32 %v943, 1.0
    %v945 = vmul.f32 %v944, 0.5
    %v946 = vtanh.pop %v941
    %v947 = vsel %vm69, %v945, %v946
    %948 = vrot.lane.b32.xlu0 %v947, 96
    %v949 = vpop.permute.xlu0 %948
    %950 = vrot.lane.b32.xlu0 %v947, 64
    %v951 = vpop.permute.xlu0 %950
    %952 = vrot.lane.b32.xlu0 %v947, 32
    %v953 = vpop.permute.xlu0 %952
    %v954 = vmul.f32 %v949, %v923
    %v955 = vmul.f32 %v947, %v953
    %v956 = vadd.f32 %v954, %v955
    %v957 = vtanh.pop %v956
    %v958 = vmul.f32 %v951, %v957
    %v959 = vld [vmem:[#allocation2 + $0x38] sm:$0xff]
    %v960 = vpack.c.bf16 %v958, %v958
    %961 = vmatpush.bf16.msra.mxu0 %v721
    %962 = vmatpush.bf16.msra.mxu0 %v720
    %963 = vmatpush.bf16.msra.mxu0 %v719
    %964 = vmatpush.bf16.msra.mxu0 %v718
    %965 = vmatpush.bf16.msra.mxu0 %v717
    %966 = vmatpush.bf16.msra.mxu0 %v716
    %967 = vmatpush.bf16.msra.mxu0 %v715
    %968 = vmatpush.bf16.msra.mxu0 %v714
    %969 = vmatmul.bf16.gmra.mxu0 %v960
    %v970 = vpop.f32.mrf.mxu0
    %v971 = vadd.f32 0.0, %v970
    %v972 = vpop.f32.mrf.mxu0
    %973 = vdwg.mxu0
    %v974 = vadd.f32 %v959, %v971
    %v975 = vmul.f32 %v974, 0.5
    %v976 = vtanh.pop %v975
    %v977 = vadd.f32 %v976, 1.0
    %v978 = vmul.f32 %v977, 0.5
    %v979 = vtanh.pop %v974
    %v980 = vsel %vm69, %v978, %v979
    %981 = vrot.lane.b32.xlu0 %v980, 96
    %v982 = vpop.permute.xlu0 %981
    %983 = vrot.lane.b32.xlu0 %v980, 64
    %v984 = vpop.permute.xlu0 %983
    %985 = vrot.lane.b32.xlu0 %v980, 32
    %v986 = vpop.permute.xlu0 %985
    %v987 = vmul.f32 %v982, %v956
    %v988 = vmul.f32 %v980, %v986
    %v989 = vadd.f32 %v987, %v988
    %v990 = vtanh.pop %v989
    %v991 = vmul.f32 %v984, %v990
    %v992 = vld [vmem:[%s7] sm:$0x1]
    %v994 = vperm.slane %v992, 0
    %v996 = vmul.f32 %v991, %v994
    %997 = vadd.xlane.f32.xlu0 %v996
    %v998 = vpop.xlane.xlu0 %997
    %v999 = vld [vmem:[#allocation3] sm:$0x1]
    %v1001 = vperm.slane %v999, 0
    %v1003 = vadd.f32 %v998, %v1001
    %vm1004 = vcmask 1024
    %1005 = vst.msk [vmem:[%s9] sm:$0x3] %vm1004, %v1003
    // Predicated region
    $region46: #{lstm_model_forward.1} parent=1 // pred_check
      _
    $region47: #{lstm_model_forward.1} parent=1 // pred_check_branch
      %1007 = sbr.rel (0) target = $region49
    $region48: #{lstm_model_forward.1} parent=1 // pred_region
      _
    $region49: #{lstm_model_forward.1} parent=1 // pred_fallthru
      _
    // Predicated region
    $region50: #{lstm_model_forward.1} parent=1 // pred_check
      _
    $region51: #{lstm_model_forward.1} parent=1 // pred_check_branch
      %1009 = sbr.rel (0) target = $region53
    $region52: #{lstm_model_forward.1} parent=1 // pred_region
      _
    $region53: #{lstm_model_forward.1} parent=1 // pred_fallthru
      _
    %1010 = vsyncpa [#allocation5], 1
    %1011 = vsyncpa [#allocation7], 1

</llo_original>
